<compile_context>
chip_gen: v6e
topology: v6e:2x2x1
jax: 0.10.0
libtpu: 0.0.40
codegen_flags: <defaults>
</compile_context>

<pallas_src>
import functools

import numpy as np
import jax
import jax.numpy as jnp
from jax import lax
from jax.experimental import pallas as pl
from jax.experimental.pallas import tpu as pltpu


# ---------------------------------------------------------------------------
# Fused kernel
# ---------------------------------------------------------------------------
def _vae_lstm_kernel(x_ref, w_ref, whh_ref, misc_ref, p_ref,
                     xrec_ref, scal_ref, gproj_ref, hs_ref,
                     *, B, T, H, L, O):
    TB, OP = x_ref.shape            # TB = T*Bp rows (row r = t*Bp + b)
    Bp = TB // T                    # batch padded to the f32 sublane width (8)
    G = 4 * H                       # gate width (== OP == 128 for this config)

    # ---- hoisted lane masks (shared by both recurrences) -------------------
    gl = lax.broadcasted_iota(jnp.int32, (Bp, G), 1)
    g_mask = gl >= 3 * H                       # lanes of gate g (tanh lanes)
    scale = jnp.where(g_mask, 1.0, 0.5)        # sigmoid(x) = 0.5 + 0.5*tanh(x/2)

    # ---- views into the packed slabs ----------------------------------------
    ewih = w_ref[0:OP, :]                        # (OP, G)  rows >= D are zero
    dwih = w_ref[OP:OP + L, :]                   # (L,  G)
    wmv = w_ref[OP + L:OP + L + H, :]            # (H,  G)  lanes [0:L]=Wm [L:2L]=Wv
    wo = w_ref[OP + L + H:OP + L + 2 * H, :]     # (H,  G)  lanes >= O are zero
    e_whh = whh_ref[0:H, :]                      # (H, G) bf16
    d_whh = whh_ref[H:2 * H, :]                  # (H, G) bf16

    eps = misc_ref[0:Bp, 0:L]                    # (Bp, L)  eps ~ U[0,1)
    eb = misc_ref[Bp:Bp + 1, :]                  # (1, G)  enc b_ih + b_hh
    db = misc_ref[Bp + 1:Bp + 2, :]              # (1, G)  dec b_ih + b_hh
    bmv = misc_ref[Bp + 2:Bp + 3, :]             # (1, G)  [b_mean | b_logvar]
    bo = misc_ref[Bp + 3:Bp + 4, :]              # (1, G)  lanes >= O are zero

    x = x_ref[...]                               # (TB, OP), lanes >= D are zero

    # ---- shared LSTM recurrence (bf16 MXU operands, f32 accumulate) --------
    def lstm_loop(whh_bf16, h0, c0, store_h):
        def body(t, carry):
            h, c = carry
            row = pl.multiple_of(t * Bp, Bp)
            gin = gproj_ref[pl.ds(row, Bp), :]                      # (Bp, G)
            gates = gin + jnp.dot(h.astype(jnp.bfloat16), whh_bf16,
                                  preferred_element_type=jnp.float32)
            th = jnp.tanh(gates * scale)          # one full-vreg EUP push
            act = jnp.where(g_mask, th, 0.5 + 0.5 * th)   # [sig i,f,o | tanh g]
            i_g = act[:, 0:H]
            f_g = act[:, H:2 * H]
            o_g = act[:, 2 * H:3 * H]
            g_g = act[:, 3 * H:4 * H]
            c_new = f_g * c + i_g * g_g
            h_new = o_g * jnp.tanh(c_new)
            if store_h:
                hs_ref[pl.ds(row, Bp), :] = h_new
            return h_new, c_new
        return lax.fori_loop(0, T, body, (h0, c0), unroll=True)

    # ---- encoder: hoisted input projection + serial recurrence -------------
    gproj_ref[...] = jnp.dot(x, ewih, preferred_element_type=jnp.float32) + eb
    zeros = jnp.zeros((Bp, H), jnp.float32)
    h_enc, c_enc = lstm_loop(e_whh, zeros, zeros, store_h=False)

    # ---- latent head + reparameterization -----------------------------------
    lat = jnp.dot(h_enc, wmv, preferred_element_type=jnp.float32) + bmv
    mean = lat[:, 0:L]
    logvar = lat[:, L:2 * L]
    std = jnp.exp(0.5 * logvar)
    z = mean + eps * std                                   # (Bp, L)

    # ---- decoder input: z.repeat(1,T,1).view(B,T,L) interleave + projection -
    # p_ref is a static 0/1 matrix: decoder input at row r=t*Bp+b is
    # z[(b*T + t) % B]; padded batch rows select nothing (bias only).
    zp = jnp.dot(z, dwih, preferred_element_type=jnp.float32)       # (Bp, G)
    gproj_ref[...] = jnp.dot(p_ref[...], zp,
                             preferred_element_type=jnp.float32) + db

    # ---- decoder (initial state = encoder final state) ----------------------
    lstm_loop(d_whh, h_enc, c_enc, store_h=True)

    # ---- output linear (lane-dense) + losses --------------------------------
    y = jnp.dot(hs_ref[...], wo, preferred_element_type=jnp.float32) + bo
    xrec_ref[...] = y                                                # (TB, OP)

    rows = lax.broadcasted_iota(jnp.int32, (TB, OP), 0)
    row_mask = ((rows & (Bp - 1)) < B).astype(jnp.float32)   # valid batch rows
    diff = (y - x) * row_mask            # padded lanes of y and x are both zero
    recon = jnp.sum(diff * diff, keepdims=True) * (1.0 / (T * B * O))

    bmask = (lax.broadcasted_iota(jnp.int32, (Bp, L), 0) < B).astype(jnp.float32)
    # std*std == exp(logvar): avoids a second exp for the KLD
    kld_sum = jnp.sum((1.0 + logvar - mean * mean - std * std) * bmask,
                      keepdims=True)
    kld = (-0.5 / B) * kld_sum
    loss = recon + 0.00025 * kld

    lane = lax.broadcasted_iota(jnp.int32, (1, OP), 1)
    scal_ref[...] = (jnp.where(lane == 0, loss, 0.0)
                     + jnp.where(lane == 1, recon, 0.0)
                     + jnp.where(lane == 2, -kld, 0.0))


# ---------------------------------------------------------------------------
# Parameter init (deterministic; shapes follow the PyTorch module,
# weights stored transposed, gates in PyTorch order [i, f, g, o])
# ---------------------------------------------------------------------------
def init_params(key, input_size, hidden_size, latent_size, output_size):
    H = hidden_size
    k = 1.0 / float(H) ** 0.5
    keys = jax.random.split(key, 14)

    def u(kk, shape, bound):
        return jax.random.uniform(kk, shape, jnp.float32, -bound, bound)

    return dict(
        enc_wih=u(keys[0], (input_size, 4 * H), k),                    # W_ih^T
        enc_whh=u(keys[1], (H, 4 * H), k),                             # W_hh^T
        enc_b=u(keys[2], (1, 4 * H), k) + u(keys[3], (1, 4 * H), k),   # b_ih+b_hh
        wm=u(keys[4], (H, latent_size), k),
        bm=u(keys[5], (1, latent_size), k),
        wv=u(keys[6], (H, latent_size), k),
        bv=u(keys[7], (1, latent_size), k),
        dec_wih=u(keys[8], (latent_size, 4 * H), k),
        dec_whh=u(keys[9], (H, 4 * H), k),
        dec_b=u(keys[10], (1, 4 * H), k) + u(keys[11], (1, 4 * H), k),
        wo=u(keys[12], (H, output_size), k),
        bo=u(keys[13], (1, output_size), k),
    )


def _permute_gates(w, H):
    """Reorder gate columns from PyTorch's [i, f, g, o] to kernel [i, f, o, g]."""
    return jnp.concatenate([w[..., 0:2 * H], w[..., 3 * H:4 * H],
                            w[..., 2 * H:3 * H]], axis=-1)


# ---------------------------------------------------------------------------
# Forward wrapper (layout plumbing in XLA, all compute in one pallas_call)
# ---------------------------------------------------------------------------
def vae_lstm_forward(params, x, eps):
    B, T, D = x.shape
    H = params['enc_whh'].shape[0]
    L = params['wm'].shape[1]
    O = params['wo'].shape[1]
    Bp = 8                        # f32 sublane width
    G = 4 * H                     # gate width
    OP = G                        # lane-dense padded input/output width
    TB = T * Bp
    assert G % 128 == 0 and B <= Bp and D <= OP and O <= OP and 2 * L <= G

    # gate-permuted parameters (kernel gate order [i, f, o, g])
    ewih = _permute_gates(params['enc_wih'], H)
    ewhh = _permute_gates(params['enc_whh'], H)
    eb = _permute_gates(params['enc_b'], H)
    dwih = _permute_gates(params['dec_wih'], H)
    dwhh = _permute_gates(params['dec_whh'], H)
    db = _permute_gates(params['dec_b'], H)

    # x: time-major, batch padded to Bp, lanes padded to OP (row r = t*Bp + b)
    x_t = jnp.transpose(x, (1, 0, 2)).astype(jnp.float32)             # (T,B,D)
    x_pad = jnp.pad(x_t, ((0, 0), (0, Bp - B), (0, OP - D))).reshape(TB, OP)

    # packed f32 weight slab: [enc W_ih (OP rows) | dec W_ih | Wm|Wv | W_out]
    w_slab = jnp.concatenate([
        jnp.pad(ewih, ((0, OP - D), (0, 0))),
        dwih,
        jnp.pad(jnp.concatenate([params['wm'], params['wv']], axis=1),
                ((0, 0), (0, G - 2 * L))),
        jnp.pad(params['wo'], ((0, 0), (0, G - O))),
    ], axis=0).astype(jnp.float32)                                    # (OP+L+2H, G)

    # recurrent weights: bf16 MXU operands (f32 accumulation inside the kernel)
    whh_slab = jnp.concatenate([ewhh, dwhh], axis=0).astype(jnp.bfloat16)

    # misc slab: eps rows + all bias rows, padded to (2*Bp, G)
    misc = jnp.concatenate([
        jnp.pad(eps.astype(jnp.float32), ((0, Bp - B), (0, G - L))),
        eb, db,
        jnp.pad(jnp.concatenate([params['bm'], params['bv']], axis=1),
                ((0, 0), (0, G - 2 * L))),
        jnp.pad(params['bo'], ((0, 0), (0, G - O))),
        jnp.zeros((Bp - 4, G), jnp.float32),
    ], axis=0)

    # static 0/1 selection matrix reproducing z.repeat(1,T,1).view(B,T,L):
    # decoder input at flat row r = t*Bp + b is z[(b*T + t) % B]
    p_np = np.zeros((TB, Bp), np.float32)
    for t in range(T):
        for b in range(B):
            p_np[t * Bp + b, (b * T + t) % B] = 1.0
    p_mat = jnp.asarray(p_np)

    kernel = functools.partial(_vae_lstm_kernel, B=B, T=T, H=H, L=L, O=O)
    vspec = pl.BlockSpec(memory_space=pltpu.MemorySpace.VMEM)
    xrec_flat, scal = pl.pallas_call(
        kernel,
        out_shape=(jax.ShapeDtypeStruct((TB, OP), jnp.float32),   # lane-dense recon
                   jax.ShapeDtypeStruct((1, OP), jnp.float32)),   # loss|recon|-KLD
        in_specs=[vspec] * 5,
        out_specs=(vspec, vspec),
        scratch_shapes=[pltpu.VMEM((TB, G), jnp.float32),   # gate input projections
                        pltpu.VMEM((TB, H), jnp.float32)],  # decoder hidden states
    )(x_pad, w_slab, whh_slab, misc, p_mat)

    x_recon = jnp.transpose(
        xrec_flat[:, :O].reshape(T, Bp, O)[:, :B, :], (1, 0, 2))
    return scal[0, 0], x_recon, (scal[0, 1], scal[0, 2])


# ---------------------------------------------------------------------------
# Pure-JAX reference (mirrors the PyTorch module) for validation
# ---------------------------------------------------------------------------
def vae_lstm_reference(params, x, eps):
    B, T, D = x.shape
    H = params['enc_whh'].shape[0]
    L = params['wm'].shape[1]

    def run_lstm(seq, wih, whh, b, h0, c0):
        def step(carry, x_t):
            h, c = carry
            gates = x_t @ wih + h @ whh + b
            i = jax.nn.sigmoid(gates[:, 0:H])
            f = jax.nn.sigmoid(gates[:, H:2 * H])
            g = jnp.tanh(gates[:, 2 * H:3 * H])
            o = jax.nn.sigmoid(gates[:, 3 * H:4 * H])
            c = f * c + i * g
            h = o * jnp.tanh(c)
            return (h, c), h
        (h, c), hs = lax.scan(step, (h0, c0), seq)
        return h, c, hs

    x_t = jnp.transpose(x, (1, 0, 2))
    zeros = jnp.zeros((B, H), jnp.float32)
    h_enc, c_enc, _ = run_lstm(x_t, params['enc_wih'], params['enc_whh'],
                               params['enc_b'], zeros, zeros)
    mean = h_enc @ params['wm'] + params['bm']
    logvar = h_enc @ params['wv'] + params['bv']
    std = jnp.exp(0.5 * logvar)
    z = mean + eps * std
    z_dec = jnp.tile(z, (T, 1)).reshape(B, T, L)   # z.repeat(1,T,1).view(B,T,L)
    _, _, hs = run_lstm(jnp.transpose(z_dec, (1, 0, 2)),
                        params['dec_wih'], params['dec_whh'], params['dec_b'],
                        h_enc, c_enc)
    x_recon = jnp.transpose(hs @ params['wo'] + params['bo'], (1, 0, 2))
    recon = jnp.mean((x_recon - x) ** 2)
    kld = jnp.mean(-0.5 * jnp.sum(1.0 + logvar - mean ** 2 - jnp.exp(logvar),
                                  axis=1))
    loss = recon + 0.00025 * kld
    return loss, x_recon, (recon, -kld)


if __name__ == "__main__":
    # configs: input_size=4, hidden_size=32, latent_size=16, output_size=4
    B, T = 2, 8
    input_size, hidden_size, latent_size, output_size = 4, 32, 16, 4

    key = jax.random.PRNGKey(0)
    kx, keps, kp = jax.random.split(key, 3)

    x = jax.random.normal(kx, (B, T, input_size), jnp.float32)
    # TODO(synk): torch.rand_like (U[0,1)) is sampled host-side and passed in;
    # an in-kernel pltpu.prng_* draw would break bit-exact validation.
    eps = jax.random.uniform(keps, (B, latent_size), jnp.float32)
    params = init_params(kp, input_size, hidden_size, latent_size, output_size)

    fwd = jax.jit(vae_lstm_forward)
    loss, x_recon, (recon_loss, kld_loss) = fwd(params, x, eps)
    jax.block_until_ready((loss, x_recon, recon_loss, kld_loss))

    # Correctness check against the pure-f32 reference (kernel uses bf16 only
    # for the recurrent MXU operands, so 2e-2 tolerance has ample margin).
    rl, rx, (rr, rk) = jax.jit(vae_lstm_reference)(params, x, eps)
    np.testing.assert_allclose(np.asarray(x_recon), np.asarray(rx),
                               rtol=2e-2, atol=2e-2)
    np.testing.assert_allclose(float(loss), float(rl), rtol=2e-2, atol=2e-2)
    np.testing.assert_allclose(float(recon_loss), float(rr), rtol=2e-2, atol=2e-2)
    np.testing.assert_allclose(float(kld_loss), float(rk), rtol=2e-2, atol=2e-2)

    assert x_recon.shape == (B, T, output_size)
    print("KERNEL_OK")
</pallas_src>

<mosaic_0001>
module attributes {stable_mosaic.version = 11 : i64} {
  func.func @_vae_lstm_kernel(%arg0: memref<64x128xf32, #tpu.memory_space<vmem>>, %arg1: memref<208x128xf32, #tpu.memory_space<vmem>>, %arg2: memref<64x128xbf16, #tpu.memory_space<vmem>>, %arg3: memref<16x128xf32, #tpu.memory_space<vmem>>, %arg4: memref<64x8xf32, #tpu.memory_space<vmem>>, %arg5: memref<64x128xf32, #tpu.memory_space<vmem>>, %arg6: memref<1x128xf32, #tpu.memory_space<vmem>>, %arg7: memref<64x128xf32, #tpu.memory_space<vmem>>, %arg8: memref<64x32xf32, #tpu.memory_space<vmem>>) attributes {dimension_semantics = [], scalar_prefetch = 0 : i64, scratch_operands = 2 : i64, tpu.core_type = #tpu.core_type<tc>} {
    %0 = tpu.iota {dimensions = array<i32: 1>} : vector<8x128xi32>
    %c96_i32 = arith.constant 96 : i32
    %1 = vector.broadcast %c96_i32 : i32 to vector<8x128xi32>
    %2 = arith.cmpi sge, %0, %1 : vector<8x128xi32>
    %cst = arith.constant 1.000000e+00 : f32
    %cst_0 = arith.constant 5.000000e-01 : f32
    %3 = vector.broadcast %cst : f32 to vector<8x128xf32>
    %4 = vector.broadcast %cst_0 : f32 to vector<8x128xf32>
    %5 = arith.select %2, %3, %4 : vector<8x128xi1>, vector<8x128xf32>
    %c0 = arith.constant 0 : index
    %c0_1 = arith.constant 0 : index
    %6 = vector.load %arg1[%c0, %c0_1] : memref<208x128xf32, #tpu.memory_space<vmem>>, vector<128x128xf32>
    %c128 = arith.constant 128 : index
    %c0_2 = arith.constant 0 : index
    %7 = vector.load %arg1[%c128, %c0_2] : memref<208x128xf32, #tpu.memory_space<vmem>>, vector<16x128xf32>
    %c144 = arith.constant 144 : index
    %c0_3 = arith.constant 0 : index
    %8 = vector.load %arg1[%c144, %c0_3] : memref<208x128xf32, #tpu.memory_space<vmem>>, vector<32x128xf32>
    %c176 = arith.constant 176 : index
    %c0_4 = arith.constant 0 : index
    %9 = vector.load %arg1[%c176, %c0_4] : memref<208x128xf32, #tpu.memory_space<vmem>>, vector<32x128xf32>
    %c0_5 = arith.constant 0 : index
    %c0_6 = arith.constant 0 : index
    %10 = vector.load %arg2[%c0_5, %c0_6] : memref<64x128xbf16, #tpu.memory_space<vmem>>, vector<32x128xbf16>
    %c32 = arith.constant 32 : index
    %c0_7 = arith.constant 0 : index
    %11 = vector.load %arg2[%c32, %c0_7] : memref<64x128xbf16, #tpu.memory_space<vmem>>, vector<32x128xbf16>
    %c0_8 = arith.constant 0 : index
    %c0_9 = arith.constant 0 : index
    %12 = vector.load %arg3[%c0_8, %c0_9] : memref<16x128xf32, #tpu.memory_space<vmem>>, vector<8x16xf32>
    %c8 = arith.constant 8 : index
    %c0_10 = arith.constant 0 : index
    %13 = vector.load %arg3[%c8, %c0_10] : memref<16x128xf32, #tpu.memory_space<vmem>>, vector<1x128xf32>
    %c9 = arith.constant 9 : index
    %c0_11 = arith.constant 0 : index
    %14 = vector.load %arg3[%c9, %c0_11] : memref<16x128xf32, #tpu.memory_space<vmem>>, vector<1x128xf32>
    %c10 = arith.constant 10 : index
    %c0_12 = arith.constant 0 : index
    %15 = vector.load %arg3[%c10, %c0_12] : memref<16x128xf32, #tpu.memory_space<vmem>>, vector<1x128xf32>
    %c11 = arith.constant 11 : index
    %c0_13 = arith.constant 0 : index
    %16 = vector.load %arg3[%c11, %c0_13] : memref<16x128xf32, #tpu.memory_space<vmem>>, vector<1x128xf32>
    %c0_14 = arith.constant 0 : index
    %c0_15 = arith.constant 0 : index
    %17 = vector.load %arg0[%c0_14, %c0_15] : memref<64x128xf32, #tpu.memory_space<vmem>>, vector<64x128xf32>
    %cst_16 = arith.constant dense<0.000000e+00> : vector<64x128xf32>
    %18 = tpu.matmul %17, %6, %cst_16 {dimension_numbers = #tpu.dot_dimension_numbers<[1], [0], [0], [1], [0, 0, 1, 1], [], []>} : vector<64x128xf32>, vector<128x128xf32>, vector<64x128xf32> -> vector<64x128xf32>
    %19 = vector.broadcast %13 : vector<1x128xf32> to vector<64x128xf32>
    %20 = arith.addf %18, %19 : vector<64x128xf32>
    %c0_17 = arith.constant 0 : index
    %c0_18 = arith.constant 0 : index
    %21 = vector.load %arg7[%c0_17, %c0_18] : memref<64x128xf32, #tpu.memory_space<vmem>>, vector<64x128xf32>
    tpu.vector_store %arg7[%c0_17, %c0_18], %20 {strides = array<i32>} : memref<64x128xf32, #tpu.memory_space<vmem>>, vector<64x128xf32>,
    %cst_19 = arith.constant 0.000000e+00 : f32
    %22 = vector.broadcast %cst_19 : f32 to vector<8x32xf32>
    %c0_i32 = arith.constant 0 : i32
    %c8_i32 = arith.constant 8 : i32
    %23 = arith.muli %c0_i32, %c8_i32 : i32
    %24 = tpu.assume_multiple %23, 8 : i32
    %25 = arith.index_cast %24 : i32 to index
    %c0_20 = arith.constant 0 : index
    %26 = vector.load %arg7[%25, %c0_20] : memref<64x128xf32, #tpu.memory_space<vmem>>, vector<8x128xf32>
    %27 = arith.truncf %22 : vector<8x32xf32> to vector<8x32xbf16>
    %cst_21 = arith.constant dense<0.000000e+00> : vector<8x128xf32>
    %28 = tpu.matmul %27, %10, %cst_21 {dimension_numbers = #tpu.dot_dimension_numbers<[1], [0], [0], [1], [0, 0, 1, 1], [], []>} : vector<8x32xbf16>, vector<32x128xbf16>, vector<8x128xf32> -> vector<8x128xf32>
    %29 = arith.addf %26, %28 : vector<8x128xf32>
    %30 = arith.mulf %29, %5 : vector<8x128xf32>
    %31 = math.tanh %30 : vector<8x128xf32>
    %cst_22 = arith.constant 5.000000e-01 : f32
    %32 = vector.broadcast %cst_22 : f32 to vector<8x128xf32>
    %33 = arith.mulf %32, %31 : vector<8x128xf32>
    %cst_23 = arith.constant 5.000000e-01 : f32
    %34 = vector.broadcast %cst_23 : f32 to vector<8x128xf32>
    %35 = arith.addf %34, %33 : vector<8x128xf32>
    %36 = arith.select %2, %31, %35 : vector<8x128xi1>, vector<8x128xf32>
    %37 = vector.extract_strided_slice %36 {offsets = [0, 0], sizes = [8, 32], strides = [1, 1]} : vector<8x128xf32> to vector<8x32xf32>
    %38 = vector.extract_strided_slice %36 {offsets = [0, 32], sizes = [8, 32], strides = [1, 1]} : vector<8x128xf32> to vector<8x32xf32>
    %39 = vector.extract_strided_slice %36 {offsets = [0, 64], sizes = [8, 32], strides = [1, 1]} : vector<8x128xf32> to vector<8x32xf32>
    %40 = vector.extract_strided_slice %36 {offsets = [0, 96], sizes = [8, 32], strides = [1, 1]} : vector<8x128xf32> to vector<8x32xf32>
    %41 = arith.mulf %38, %22 : vector<8x32xf32>
    %42 = arith.mulf %37, %40 : vector<8x32xf32>
    %43 = arith.addf %41, %42 : vector<8x32xf32>
    %44 = math.tanh %43 : vector<8x32xf32>
    %45 = arith.mulf %39, %44 : vector<8x32xf32>
    %c1_i32 = arith.constant 1 : i32
    %c8_i32_24 = arith.constant 8 : i32
    %46 = arith.muli %c1_i32, %c8_i32_24 : i32
    %47 = tpu.assume_multiple %46, 8 : i32
    %48 = arith.index_cast %47 : i32 to index
    %c0_25 = arith.constant 0 : index
    %49 = vector.load %arg7[%48, %c0_25] : memref<64x128xf32, #tpu.memory_space<vmem>>, vector<8x128xf32>
    %50 = arith.truncf %45 : vector<8x32xf32> to vector<8x32xbf16>
    %cst_26 = arith.constant dense<0.000000e+00> : vector<8x128xf32>
    %51 = tpu.matmul %50, %10, %cst_26 {dimension_numbers = #tpu.dot_dimension_numbers<[1], [0], [0], [1], [0, 0, 1, 1], [], []>} : vector<8x32xbf16>, vector<32x128xbf16>, vector<8x128xf32> -> vector<8x128xf32>
    %52 = arith.addf %49, %51 : vector<8x128xf32>
    %53 = arith.mulf %52, %5 : vector<8x128xf32>
    %54 = math.tanh %53 : vector<8x128xf32>
    %cst_27 = arith.constant 5.000000e-01 : f32
    %55 = vector.broadcast %cst_27 : f32 to vector<8x128xf32>
    %56 = arith.mulf %55, %54 : vector<8x128xf32>
    %cst_28 = arith.constant 5.000000e-01 : f32
    %57 = vector.broadcast %cst_28 : f32 to vector<8x128xf32>
    %58 = arith.addf %57, %56 : vector<8x128xf32>
    %59 = arith.select %2, %54, %58 : vector<8x128xi1>, vector<8x128xf32>
    %60 = vector.extract_strided_slice %59 {offsets = [0, 0], sizes = [8, 32], strides = [1, 1]} : vector<8x128xf32> to vector<8x32xf32>
    %61 = vector.extract_strided_slice %59 {offsets = [0, 32], sizes = [8, 32], strides = [1, 1]} : vector<8x128xf32> to vector<8x32xf32>
    %62 = vector.extract_strided_slice %59 {offsets = [0, 64], sizes = [8, 32], strides = [1, 1]} : vector<8x128xf32> to vector<8x32xf32>
    %63 = vector.extract_strided_slice %59 {offsets = [0, 96], sizes = [8, 32], strides = [1, 1]} : vector<8x128xf32> to vector<8x32xf32>
    %64 = arith.mulf %61, %43 : vector<8x32xf32>
    %65 = arith.mulf %60, %63 : vector<8x32xf32>
    %66 = arith.addf %64, %65 : vector<8x32xf32>
    %67 = math.tanh %66 : vector<8x32xf32>
    %68 = arith.mulf %62, %67 : vector<8x32xf32>
    %c2_i32 = arith.constant 2 : i32
    %c8_i32_29 = arith.constant 8 : i32
    %69 = arith.muli %c2_i32, %c8_i32_29 : i32
    %70 = tpu.assume_multiple %69, 8 : i32
    %71 = arith.index_cast %70 : i32 to index
    %c0_30 = arith.constant 0 : index
    %72 = vector.load %arg7[%71, %c0_30] : memref<64x128xf32, #tpu.memory_space<vmem>>, vector<8x128xf32>
    %73 = arith.truncf %68 : vector<8x32xf32> to vector<8x32xbf16>
    %cst_31 = arith.constant dense<0.000000e+00> : vector<8x128xf32>
    %74 = tpu.matmul %73, %10, %cst_31 {dimension_numbers = #tpu.dot_dimension_numbers<[1], [0], [0], [1], [0, 0, 1, 1], [], []>} : vector<8x32xbf16>, vector<32x128xbf16>, vector<8x128xf32> -> vector<8x128xf32>
    %75 = arith.addf %72, %74 : vector<8x128xf32>
    %76 = arith.mulf %75, %5 : vector<8x128xf32>
    %77 = math.tanh %76 : vector<8x128xf32>
    %cst_32 = arith.constant 5.000000e-01 : f32
    %78 = vector.broadcast %cst_32 : f32 to vector<8x128xf32>
    %79 = arith.mulf %78, %77 : vector<8x128xf32>
    %cst_33 = arith.constant 5.000000e-01 : f32
    %80 = vector.broadcast %cst_33 : f32 to vector<8x128xf32>
    %81 = arith.addf %80, %79 : vector<8x128xf32>
    %82 = arith.select %2, %77, %81 : vector<8x128xi1>, vector<8x128xf32>
    %83 = vector.extract_strided_slice %82 {offsets = [0, 0], sizes = [8, 32], strides = [1, 1]} : vector<8x128xf32> to vector<8x32xf32>
    %84 = vector.extract_strided_slice %82 {offsets = [0, 32], sizes = [8, 32], strides = [1, 1]} : vector<8x128xf32> to vector<8x32xf32>
    %85 = vector.extract_strided_slice %82 {offsets = [0, 64], sizes = [8, 32], strides = [1, 1]} : vector<8x128xf32> to vector<8x32xf32>
    %86 = vector.extract_strided_slice %82 {offsets = [0, 96], sizes = [8, 32], strides = [1, 1]} : vector<8x128xf32> to vector<8x32xf32>
    %87 = arith.mulf %84, %66 : vector<8x32xf32>
    %88 = arith.mulf %83, %86 : vector<8x32xf32>
    %89 = arith.addf %87, %88 : vector<8x32xf32>
    %90 = math.tanh %89 : vector<8x32xf32>
    %91 = arith.mulf %85, %90 : vector<8x32xf32>
    %c3_i32 = arith.constant 3 : i32
    %c8_i32_34 = arith.constant 8 : i32
    %92 = arith.muli %c3_i32, %c8_i32_34 : i32
    %93 = tpu.assume_multiple %92, 8 : i32
    %94 = arith.index_cast %93 : i32 to index
    %c0_35 = arith.constant 0 : index
    %95 = vector.load %arg7[%94, %c0_35] : memref<64x128xf32, #tpu.memory_space<vmem>>, vector<8x128xf32>
    %96 = arith.truncf %91 : vector<8x32xf32> to vector<8x32xbf16>
    %cst_36 = arith.constant dense<0.000000e+00> : vector<8x128xf32>
    %97 = tpu.matmul %96, %10, %cst_36 {dimension_numbers = #tpu.dot_dimension_numbers<[1], [0], [0], [1], [0, 0, 1, 1], [], []>} : vector<8x32xbf16>, vector<32x128xbf16>, vector<8x128xf32> -> vector<8x128xf32>
    %98 = arith.addf %95, %97 : vector<8x128xf32>
    %99 = arith.mulf %98, %5 : vector<8x128xf32>
    %100 = math.tanh %99 : vector<8x128xf32>
    %cst_37 = arith.constant 5.000000e-01 : f32
    %101 = vector.broadcast %cst_37 : f32 to vector<8x128xf32>
    %102 = arith.mulf %101, %100 : vector<8x128xf32>
    %cst_38 = arith.constant 5.000000e-01 : f32
    %103 = vector.broadcast %cst_38 : f32 to vector<8x128xf32>
    %104 = arith.addf %103, %102 : vector<8x128xf32>
    %105 = arith.select %2, %100, %104 : vector<8x128xi1>, vector<8x128xf32>
    %106 = vector.extract_strided_slice %105 {offsets = [0, 0], sizes = [8, 32], strides = [1, 1]} : vector<8x128xf32> to vector<8x32xf32>
    %107 = vector.extract_strided_slice %105 {offsets = [0, 32], sizes = [8, 32], strides = [1, 1]} : vector<8x128xf32> to vector<8x32xf32>
    %108 = vector.extract_strided_slice %105 {offsets = [0, 64], sizes = [8, 32], strides = [1, 1]} : vector<8x128xf32> to vector<8x32xf32>
    %109 = vector.extract_strided_slice %105 {offsets = [0, 96], sizes = [8, 32], strides = [1, 1]} : vector<8x128xf32> to vector<8x32xf32>
    %110 = arith.mulf %107, %89 : vector<8x32xf32>
    %111 = arith.mulf %106, %109 : vector<8x32xf32>
    %112 = arith.addf %110, %111 : vector<8x32xf32>
    %113 = math.tanh %112 : vector<8x32xf32>
    %114 = arith.mulf %108, %113 : vector<8x32xf32>
    %c4_i32 = arith.constant 4 : i32
    %c8_i32_39 = arith.constant 8 : i32
    %115 = arith.muli %c4_i32, %c8_i32_39 : i32
    %116 = tpu.assume_multiple %115, 8 : i32
    %117 = arith.index_cast %116 : i32 to index
    %c0_40 = arith.constant 0 : index
    %118 = vector.load %arg7[%117, %c0_40] : memref<64x128xf32, #tpu.memory_space<vmem>>, vector<8x128xf32>
    %119 = arith.truncf %114 : vector<8x32xf32> to vector<8x32xbf16>
    %cst_41 = arith.constant dense<0.000000e+00> : vector<8x128xf32>
    %120 = tpu.matmul %119, %10, %cst_41 {dimension_numbers = #tpu.dot_dimension_numbers<[1], [0], [0], [1], [0, 0, 1, 1], [], []>} : vector<8x32xbf16>, vector<32x128xbf16>, vector<8x128xf32> -> vector<8x128xf32>
    %121 = arith.addf %118, %120 : vector<8x128xf32>
    %122 = arith.mulf %121, %5 : vector<8x128xf32>
    %123 = math.tanh %122 : vector<8x128xf32>
    %cst_42 = arith.constant 5.000000e-01 : f32
    %124 = vector.broadcast %cst_42 : f32 to vector<8x128xf32>
    %125 = arith.mulf %124, %123 : vector<8x128xf32>
    %cst_43 = arith.constant 5.000000e-01 : f32
    %126 = vector.broadcast %cst_43 : f32 to vector<8x128xf32>
    %127 = arith.addf %126, %125 : vector<8x128xf32>
    %128 = arith.select %2, %123, %127 : vector<8x128xi1>, vector<8x128xf32>
    %129 = vector.extract_strided_slice %128 {offsets = [0, 0], sizes = [8, 32], strides = [1, 1]} : vector<8x128xf32> to vector<8x32xf32>
    %130 = vector.extract_strided_slice %128 {offsets = [0, 32], sizes = [8, 32], strides = [1, 1]} : vector<8x128xf32> to vector<8x32xf32>
    %131 = vector.extract_strided_slice %128 {offsets = [0, 64], sizes = [8, 32], strides = [1, 1]} : vector<8x128xf32> to vector<8x32xf32>
    %132 = vector.extract_strided_slice %128 {offsets = [0, 96], sizes = [8, 32], strides = [1, 1]} : vector<8x128xf32> to vector<8x32xf32>
    %133 = arith.mulf %130, %112 : vector<8x32xf32>
    %134 = arith.mulf %129, %132 : vector<8x32xf32>
    %135 = arith.addf %133, %134 : vector<8x32xf32>
    %136 = math.tanh %135 : vector<8x32xf32>
    %137 = arith.mulf %131, %136 : vector<8x32xf32>
    %c5_i32 = arith.constant 5 : i32
    %c8_i32_44 = arith.constant 8 : i32
    %138 = arith.muli %c5_i32, %c8_i32_44 : i32
    %139 = tpu.assume_multiple %138, 8 : i32
    %140 = arith.index_cast %139 : i32 to index
    %c0_45 = arith.constant 0 : index
    %141 = vector.load %arg7[%140, %c0_45] : memref<64x128xf32, #tpu.memory_space<vmem>>, vector<8x128xf32>
    %142 = arith.truncf %137 : vector<8x32xf32> to vector<8x32xbf16>
    %cst_46 = arith.constant dense<0.000000e+00> : vector<8x128xf32>
    %143 = tpu.matmul %142, %10, %cst_46 {dimension_numbers = #tpu.dot_dimension_numbers<[1], [0], [0], [1], [0, 0, 1, 1], [], []>} : vector<8x32xbf16>, vector<32x128xbf16>, vector<8x128xf32> -> vector<8x128xf32>
    %144 = arith.addf %141, %143 : vector<8x128xf32>
    %145 = arith.mulf %144, %5 : vector<8x128xf32>
    %146 = math.tanh %145 : vector<8x128xf32>
    %cst_47 = arith.constant 5.000000e-01 : f32
    %147 = vector.broadcast %cst_47 : f32 to vector<8x128xf32>
    %148 = arith.mulf %147, %146 : vector<8x128xf32>
    %cst_48 = arith.constant 5.000000e-01 : f32
    %149 = vector.broadcast %cst_48 : f32 to vector<8x128xf32>
    %150 = arith.addf %149, %148 : vector<8x128xf32>
    %151 = arith.select %2, %146, %150 : vector<8x128xi1>, vector<8x128xf32>
    %152 = vector.extract_strided_slice %151 {offsets = [0, 0], sizes = [8, 32], strides = [1, 1]} : vector<8x128xf32> to vector<8x32xf32>
    %153 = vector.extract_strided_slice %151 {offsets = [0, 32], sizes = [8, 32], strides = [1, 1]} : vector<8x128xf32> to vector<8x32xf32>
    %154 = vector.extract_strided_slice %151 {offsets = [0, 64], sizes = [8, 32], strides = [1, 1]} : vector<8x128xf32> to vector<8x32xf32>
    %155 = vector.extract_strided_slice %151 {offsets = [0, 96], sizes = [8, 32], strides = [1, 1]} : vector<8x128xf32> to vector<8x32xf32>
    %156 = arith.mulf %153, %135 : vector<8x32xf32>
    %157 = arith.mulf %152, %155 : vector<8x32xf32>
    %158 = arith.addf %156, %157 : vector<8x32xf32>
    %159 = math.tanh %158 : vector<8x32xf32>
    %160 = arith.mulf %154, %159 : vector<8x32xf32>
    %c6_i32 = arith.constant 6 : i32
    %c8_i32_49 = arith.constant 8 : i32
    %161 = arith.muli %c6_i32, %c8_i32_49 : i32
    %162 = tpu.assume_multiple %161, 8 : i32
    %163 = arith.index_cast %162 : i32 to index
    %c0_50 = arith.constant 0 : index
    %164 = vector.load %arg7[%163, %c0_50] : memref<64x128xf32, #tpu.memory_space<vmem>>, vector<8x128xf32>
    %165 = arith.truncf %160 : vector<8x32xf32> to vector<8x32xbf16>
    %cst_51 = arith.constant dense<0.000000e+00> : vector<8x128xf32>
    %166 = tpu.matmul %165, %10, %cst_51 {dimension_numbers = #tpu.dot_dimension_numbers<[1], [0], [0], [1], [0, 0, 1, 1], [], []>} : vector<8x32xbf16>, vector<32x128xbf16>, vector<8x128xf32> -> vector<8x128xf32>
    %167 = arith.addf %164, %166 : vector<8x128xf32>
    %168 = arith.mulf %167, %5 : vector<8x128xf32>
    %169 = math.tanh %168 : vector<8x128xf32>
    %cst_52 = arith.constant 5.000000e-01 : f32
    %170 = vector.broadcast %cst_52 : f32 to vector<8x128xf32>
    %171 = arith.mulf %170, %169 : vector<8x128xf32>
    %cst_53 = arith.constant 5.000000e-01 : f32
    %172 = vector.broadcast %cst_53 : f32 to vector<8x128xf32>
    %173 = arith.addf %172, %171 : vector<8x128xf32>
    %174 = arith.select %2, %169, %173 : vector<8x128xi1>, vector<8x128xf32>
    %175 = vector.extract_strided_slice %174 {offsets = [0, 0], sizes = [8, 32], strides = [1, 1]} : vector<8x128xf32> to vector<8x32xf32>
    %176 = vector.extract_strided_slice %174 {offsets = [0, 32], sizes = [8, 32], strides = [1, 1]} : vector<8x128xf32> to vector<8x32xf32>
    %177 = vector.extract_strided_slice %174 {offsets = [0, 64], sizes = [8, 32], strides = [1, 1]} : vector<8x128xf32> to vector<8x32xf32>
    %178 = vector.extract_strided_slice %174 {offsets = [0, 96], sizes = [8, 32], strides = [1, 1]} : vector<8x128xf32> to vector<8x32xf32>
    %179 = arith.mulf %176, %158 : vector<8x32xf32>
    %180 = arith.mulf %175, %178 : vector<8x32xf32>
    %181 = arith.addf %179, %180 : vector<8x32xf32>
    %182 = math.tanh %181 : vector<8x32xf32>
    %183 = arith.mulf %177, %182 : vector<8x32xf32>
    %c7_i32 = arith.constant 7 : i32
    %c8_i32_54 = arith.constant 8 : i32
    %184 = arith.muli %c7_i32, %c8_i32_54 : i32
    %185 = tpu.assume_multiple %184, 8 : i32
    %186 = arith.index_cast %185 : i32 to index
    %c0_55 = arith.constant 0 : index
    %187 = vector.load %arg7[%186, %c0_55] : memref<64x128xf32, #tpu.memory_space<vmem>>, vector<8x128xf32>
    %188 = arith.truncf %183 : vector<8x32xf32> to vector<8x32xbf16>
    %cst_56 = arith.constant dense<0.000000e+00> : vector<8x128xf32>
    %189 = tpu.matmul %188, %10, %cst_56 {dimension_numbers = #tpu.dot_dimension_numbers<[1], [0], [0], [1], [0, 0, 1, 1], [], []>} : vector<8x32xbf16>, vector<32x128xbf16>, vector<8x128xf32> -> vector<8x128xf32>
    %190 = arith.addf %187, %189 : vector<8x128xf32>
    %191 = arith.mulf %190, %5 : vector<8x128xf32>
    %192 = math.tanh %191 : vector<8x128xf32>
    %cst_57 = arith.constant 5.000000e-01 : f32
    %193 = vector.broadcast %cst_57 : f32 to vector<8x128xf32>
    %194 = arith.mulf %193, %192 : vector<8x128xf32>
    %cst_58 = arith.constant 5.000000e-01 : f32
    %195 = vector.broadcast %cst_58 : f32 to vector<8x128xf32>
    %196 = arith.addf %195, %194 : vector<8x128xf32>
    %197 = arith.select %2, %192, %196 : vector<8x128xi1>, vector<8x128xf32>
    %198 = vector.extract_strided_slice %197 {offsets = [0, 0], sizes = [8, 32], strides = [1, 1]} : vector<8x128xf32> to vector<8x32xf32>
    %199 = vector.extract_strided_slice %197 {offsets = [0, 32], sizes = [8, 32], strides = [1, 1]} : vector<8x128xf32> to vector<8x32xf32>
    %200 = vector.extract_strided_slice %197 {offsets = [0, 64], sizes = [8, 32], strides = [1, 1]} : vector<8x128xf32> to vector<8x32xf32>
    %201 = vector.extract_strided_slice %197 {offsets = [0, 96], sizes = [8, 32], strides = [1, 1]} : vector<8x128xf32> to vector<8x32xf32>
    %202 = arith.mulf %199, %181 : vector<8x32xf32>
    %203 = arith.mulf %198, %201 : vector<8x32xf32>
    %204 = arith.addf %202, %203 : vector<8x32xf32>
    %205 = math.tanh %204 : vector<8x32xf32>
    %206 = arith.mulf %200, %205 : vector<8x32xf32>
    %c8_i32_59 = arith.constant 8 : i32
    %cst_60 = arith.constant dense<0.000000e+00> : vector<8x128xf32>
    %207 = tpu.matmul %206, %8, %cst_60 {dimension_numbers = #tpu.dot_dimension_numbers<[1], [0], [0], [1], [0, 0, 1, 1], [], []>} : vector<8x32xf32>, vector<32x128xf32>, vector<8x128xf32> -> vector<8x128xf32>
    %208 = vector.broadcast %15 : vector<1x128xf32> to vector<8x128xf32>
    %209 = arith.addf %207, %208 : vector<8x128xf32>
    %210 = vector.extract_strided_slice %209 {offsets = [0, 0], sizes = [8, 16], strides = [1, 1]} : vector<8x128xf32> to vector<8x16xf32>
    %211 = vector.extract_strided_slice %209 {offsets = [0, 16], sizes = [8, 16], strides = [1, 1]} : vector<8x128xf32> to vector<8x16xf32>
    %cst_61 = arith.constant 5.000000e-01 : f32
    %212 = vector.broadcast %cst_61 : f32 to vector<8x16xf32>
    %213 = arith.mulf %212, %211 : vector<8x16xf32>
    %214 = math.exp %213 : vector<8x16xf32>
    %215 = arith.mulf %12, %214 : vector<8x16xf32>
    %216 = arith.addf %210, %215 : vector<8x16xf32>
    %cst_62 = arith.constant dense<0.000000e+00> : vector<8x128xf32>
    %217 = tpu.matmul %216, %7, %cst_62 {dimension_numbers = #tpu.dot_dimension_numbers<[1], [0], [0], [1], [0, 0, 1, 1], [], []>} : vector<8x16xf32>, vector<16x128xf32>, vector<8x128xf32> -> vector<8x128xf32>
    %c0_63 = arith.constant 0 : index
    %c0_64 = arith.constant 0 : index
    %218 = vector.load %arg4[%c0_63, %c0_64] : memref<64x8xf32, #tpu.memory_space<vmem>>, vector<64x8xf32>
    %cst_65 = arith.constant dense<0.000000e+00> : vector<64x128xf32>
    %219 = tpu.matmul %218, %217, %cst_65 {dimension_numbers = #tpu.dot_dimension_numbers<[1], [0], [0], [1], [0, 0, 1, 1], [], []>} : vector<64x8xf32>, vector<8x128xf32>, vector<64x128xf32> -> vector<64x128xf32>
    %220 = vector.broadcast %14 : vector<1x128xf32> to vector<64x128xf32>
    %221 = arith.addf %219, %220 : vector<64x128xf32>
    %c0_66 = arith.constant 0 : index
    %c0_67 = arith.constant 0 : index
    %222 = vector.load %arg7[%c0_66, %c0_67] : memref<64x128xf32, #tpu.memory_space<vmem>>, vector<64x128xf32>
    tpu.vector_store %arg7[%c0_66, %c0_67], %221 {strides = array<i32>} : memref<64x128xf32, #tpu.memory_space<vmem>>, vector<64x128xf32>,
    %c0_i32_68 = arith.constant 0 : i32
    %c8_i32_69 = arith.constant 8 : i32
    %223 = arith.muli %c0_i32_68, %c8_i32_69 : i32
    %224 = tpu.assume_multiple %223, 8 : i32
    %225 = arith.index_cast %224 : i32 to index
    %c0_70 = arith.constant 0 : index
    %226 = vector.load %arg7[%225, %c0_70] : memref<64x128xf32, #tpu.memory_space<vmem>>, vector<8x128xf32>
    %227 = arith.truncf %206 : vector<8x32xf32> to vector<8x32xbf16>
    %cst_71 = arith.constant dense<0.000000e+00> : vector<8x128xf32>
    %228 = tpu.matmul %227, %11, %cst_71 {dimension_numbers = #tpu.dot_dimension_numbers<[1], [0], [0], [1], [0, 0, 1, 1], [], []>} : vector<8x32xbf16>, vector<32x128xbf16>, vector<8x128xf32> -> vector<8x128xf32>
    %229 = arith.addf %226, %228 : vector<8x128xf32>
    %230 = arith.mulf %229, %5 : vector<8x128xf32>
    %231 = math.tanh %230 : vector<8x128xf32>
    %cst_72 = arith.constant 5.000000e-01 : f32
    %232 = vector.broadcast %cst_72 : f32 to vector<8x128xf32>
    %233 = arith.mulf %232, %231 : vector<8x128xf32>
    %cst_73 = arith.constant 5.000000e-01 : f32
    %234 = vector.broadcast %cst_73 : f32 to vector<8x128xf32>
    %235 = arith.addf %234, %233 : vector<8x128xf32>
    %236 = arith.select %2, %231, %235 : vector<8x128xi1>, vector<8x128xf32>
    %237 = vector.extract_strided_slice %236 {offsets = [0, 0], sizes = [8, 32], strides = [1, 1]} : vector<8x128xf32> to vector<8x32xf32>
    %238 = vector.extract_strided_slice %236 {offsets = [0, 32], sizes = [8, 32], strides = [1, 1]} : vector<8x128xf32> to vector<8x32xf32>
    %239 = vector.extract_strided_slice %236 {offsets = [0, 64], sizes = [8, 32], strides = [1, 1]} : vector<8x128xf32> to vector<8x32xf32>
    %240 = vector.extract_strided_slice %236 {offsets = [0, 96], sizes = [8, 32], strides = [1, 1]} : vector<8x128xf32> to vector<8x32xf32>
    %241 = arith.mulf %238, %204 : vector<8x32xf32>
    %242 = arith.mulf %237, %240 : vector<8x32xf32>
    %243 = arith.addf %241, %242 : vector<8x32xf32>
    %244 = math.tanh %243 : vector<8x32xf32>
    %245 = arith.mulf %239, %244 : vector<8x32xf32>
    %246 = arith.index_cast %224 : i32 to index
    %c0_74 = arith.constant 0 : index
    %247 = vector.load %arg8[%246, %c0_74] : memref<64x32xf32, #tpu.memory_space<vmem>>, vector<8x32xf32>
    tpu.vector_store %arg8[%246, %c0_74], %245 {strides = array<i32>} : memref<64x32xf32, #tpu.memory_space<vmem>>, vector<8x32xf32>,
    %c1_i32_75 = arith.constant 1 : i32
    %c8_i32_76 = arith.constant 8 : i32
    %248 = arith.muli %c1_i32_75, %c8_i32_76 : i32
    %249 = tpu.assume_multiple %248, 8 : i32
    %250 = arith.index_cast %249 : i32 to index
    %c0_77 = arith.constant 0 : index
    %251 = vector.load %arg7[%250, %c0_77] : memref<64x128xf32, #tpu.memory_space<vmem>>, vector<8x128xf32>
    %252 = arith.truncf %245 : vector<8x32xf32> to vector<8x32xbf16>
    %cst_78 = arith.constant dense<0.000000e+00> : vector<8x128xf32>
    %253 = tpu.matmul %252, %11, %cst_78 {dimension_numbers = #tpu.dot_dimension_numbers<[1], [0], [0], [1], [0, 0, 1, 1], [], []>} : vector<8x32xbf16>, vector<32x128xbf16>, vector<8x128xf32> -> vector<8x128xf32>
    %254 = arith.addf %251, %253 : vector<8x128xf32>
    %255 = arith.mulf %254, %5 : vector<8x128xf32>
    %256 = math.tanh %255 : vector<8x128xf32>
    %cst_79 = arith.constant 5.000000e-01 : f32
    %257 = vector.broadcast %cst_79 : f32 to vector<8x128xf32>
    %258 = arith.mulf %257, %256 : vector<8x128xf32>
    %cst_80 = arith.constant 5.000000e-01 : f32
    %259 = vector.broadcast %cst_80 : f32 to vector<8x128xf32>
    %260 = arith.addf %259, %258 : vector<8x128xf32>
    %261 = arith.select %2, %256, %260 : vector<8x128xi1>, vector<8x128xf32>
    %262 = vector.extract_strided_slice %261 {offsets = [0, 0], sizes = [8, 32], strides = [1, 1]} : vector<8x128xf32> to vector<8x32xf32>
    %263 = vector.extract_strided_slice %261 {offsets = [0, 32], sizes = [8, 32], strides = [1, 1]} : vector<8x128xf32> to vector<8x32xf32>
    %264 = vector.extract_strided_slice %261 {offsets = [0, 64], sizes = [8, 32], strides = [1, 1]} : vector<8x128xf32> to vector<8x32xf32>
    %265 = vector.extract_strided_slice %261 {offsets = [0, 96], sizes = [8, 32], strides = [1, 1]} : vector<8x128xf32> to vector<8x32xf32>
    %266 = arith.mulf %263, %243 : vector<8x32xf32>
    %267 = arith.mulf %262, %265 : vector<8x32xf32>
    %268 = arith.addf %266, %267 : vector<8x32xf32>
    %269 = math.tanh %268 : vector<8x32xf32>
    %270 = arith.mulf %264, %269 : vector<8x32xf32>
    %271 = arith.index_cast %249 : i32 to index
    %c0_81 = arith.constant 0 : index
    %272 = vector.load %arg8[%271, %c0_81] : memref<64x32xf32, #tpu.memory_space<vmem>>, vector<8x32xf32>
    tpu.vector_store %arg8[%271, %c0_81], %270 {strides = array<i32>} : memref<64x32xf32, #tpu.memory_space<vmem>>, vector<8x32xf32>,
    %c2_i32_82 = arith.constant 2 : i32
    %c8_i32_83 = arith.constant 8 : i32
    %273 = arith.muli %c2_i32_82, %c8_i32_83 : i32
    %274 = tpu.assume_multiple %273, 8 : i32
    %275 = arith.index_cast %274 : i32 to index
    %c0_84 = arith.constant 0 : index
    %276 = vector.load %arg7[%275, %c0_84] : memref<64x128xf32, #tpu.memory_space<vmem>>, vector<8x128xf32>
    %277 = arith.truncf %270 : vector<8x32xf32> to vector<8x32xbf16>
    %cst_85 = arith.constant dense<0.000000e+00> : vector<8x128xf32>
    %278 = tpu.matmul %277, %11, %cst_85 {dimension_numbers = #tpu.dot_dimension_numbers<[1], [0], [0], [1], [0, 0, 1, 1], [], []>} : vector<8x32xbf16>, vector<32x128xbf16>, vector<8x128xf32> -> vector<8x128xf32>
    %279 = arith.addf %276, %278 : vector<8x128xf32>
    %280 = arith.mulf %279, %5 : vector<8x128xf32>
    %281 = math.tanh %280 : vector<8x128xf32>
    %cst_86 = arith.constant 5.000000e-01 : f32
    %282 = vector.broadcast %cst_86 : f32 to vector<8x128xf32>
    %283 = arith.mulf %282, %281 : vector<8x128xf32>
    %cst_87 = arith.constant 5.000000e-01 : f32
    %284 = vector.broadcast %cst_87 : f32 to vector<8x128xf32>
    %285 = arith.addf %284, %283 : vector<8x128xf32>
    %286 = arith.select %2, %281, %285 : vector<8x128xi1>, vector<8x128xf32>
    %287 = vector.extract_strided_slice %286 {offsets = [0, 0], sizes = [8, 32], strides = [1, 1]} : vector<8x128xf32> to vector<8x32xf32>
    %288 = vector.extract_strided_slice %286 {offsets = [0, 32], sizes = [8, 32], strides = [1, 1]} : vector<8x128xf32> to vector<8x32xf32>
    %289 = vector.extract_strided_slice %286 {offsets = [0, 64], sizes = [8, 32], strides = [1, 1]} : vector<8x128xf32> to vector<8x32xf32>
    %290 = vector.extract_strided_slice %286 {offsets = [0, 96], sizes = [8, 32], strides = [1, 1]} : vector<8x128xf32> to vector<8x32xf32>
    %291 = arith.mulf %288, %268 : vector<8x32xf32>
    %292 = arith.mulf %287, %290 : vector<8x32xf32>
    %293 = arith.addf %291, %292 : vector<8x32xf32>
    %294 = math.tanh %293 : vector<8x32xf32>
    %295 = arith.mulf %289, %294 : vector<8x32xf32>
    %296 = arith.index_cast %274 : i32 to index
    %c0_88 = arith.constant 0 : index
    %297 = vector.load %arg8[%296, %c0_88] : memref<64x32xf32, #tpu.memory_space<vmem>>, vector<8x32xf32>
    tpu.vector_store %arg8[%296, %c0_88], %295 {strides = array<i32>} : memref<64x32xf32, #tpu.memory_space<vmem>>, vector<8x32xf32>,
    %c3_i32_89 = arith.constant 3 : i32
    %c8_i32_90 = arith.constant 8 : i32
    %298 = arith.muli %c3_i32_89, %c8_i32_90 : i32
    %299 = tpu.assume_multiple %298, 8 : i32
    %300 = arith.index_cast %299 : i32 to index
    %c0_91 = arith.constant 0 : index
    %301 = vector.load %arg7[%300, %c0_91] : memref<64x128xf32, #tpu.memory_space<vmem>>, vector<8x128xf32>
    %302 = arith.truncf %295 : vector<8x32xf32> to vector<8x32xbf16>
    %cst_92 = arith.constant dense<0.000000e+00> : vector<8x128xf32>
    %303 = tpu.matmul %302, %11, %cst_92 {dimension_numbers = #tpu.dot_dimension_numbers<[1], [0], [0], [1], [0, 0, 1, 1], [], []>} : vector<8x32xbf16>, vector<32x128xbf16>, vector<8x128xf32> -> vector<8x128xf32>
    %304 = arith.addf %301, %303 : vector<8x128xf32>
    %305 = arith.mulf %304, %5 : vector<8x128xf32>
    %306 = math.tanh %305 : vector<8x128xf32>
    %cst_93 = arith.constant 5.000000e-01 : f32
    %307 = vector.broadcast %cst_93 : f32 to vector<8x128xf32>
    %308 = arith.mulf %307, %306 : vector<8x128xf32>
    %cst_94 = arith.constant 5.000000e-01 : f32
    %309 = vector.broadcast %cst_94 : f32 to vector<8x128xf32>
    %310 = arith.addf %309, %308 : vector<8x128xf32>
    %311 = arith.select %2, %306, %310 : vector<8x128xi1>, vector<8x128xf32>
    %312 = vector.extract_strided_slice %311 {offsets = [0, 0], sizes = [8, 32], strides = [1, 1]} : vector<8x128xf32> to vector<8x32xf32>
    %313 = vector.extract_strided_slice %311 {offsets = [0, 32], sizes = [8, 32], strides = [1, 1]} : vector<8x128xf32> to vector<8x32xf32>
    %314 = vector.extract_strided_slice %311 {offsets = [0, 64], sizes = [8, 32], strides = [1, 1]} : vector<8x128xf32> to vector<8x32xf32>
    %315 = vector.extract_strided_slice %311 {offsets = [0, 96], sizes = [8, 32], strides = [1, 1]} : vector<8x128xf32> to vector<8x32xf32>
    %316 = arith.mulf %313, %293 : vector<8x32xf32>
    %317 = arith.mulf %312, %315 : vector<8x32xf32>
    %318 = arith.addf %316, %317 : vector<8x32xf32>
    %319 = math.tanh %318 : vector<8x32xf32>
    %320 = arith.mulf %314, %319 : vector<8x32xf32>
    %321 = arith.index_cast %299 : i32 to index
    %c0_95 = arith.constant 0 : index
    %322 = vector.load %arg8[%321, %c0_95] : memref<64x32xf32, #tpu.memory_space<vmem>>, vector<8x32xf32>
    tpu.vector_store %arg8[%321, %c0_95], %320 {strides = array<i32>} : memref<64x32xf32, #tpu.memory_space<vmem>>, vector<8x32xf32>,
    %c4_i32_96 = arith.constant 4 : i32
    %c8_i32_97 = arith.constant 8 : i32
    %323 = arith.muli %c4_i32_96, %c8_i32_97 : i32
    %324 = tpu.assume_multiple %323, 8 : i32
    %325 = arith.index_cast %324 : i32 to index
    %c0_98 = arith.constant 0 : index
    %326 = vector.load %arg7[%325, %c0_98] : memref<64x128xf32, #tpu.memory_space<vmem>>, vector<8x128xf32>
    %327 = arith.truncf %320 : vector<8x32xf32> to vector<8x32xbf16>
    %cst_99 = arith.constant dense<0.000000e+00> : vector<8x128xf32>
    %328 = tpu.matmul %327, %11, %cst_99 {dimension_numbers = #tpu.dot_dimension_numbers<[1], [0], [0], [1], [0, 0, 1, 1], [], []>} : vector<8x32xbf16>, vector<32x128xbf16>, vector<8x128xf32> -> vector<8x128xf32>
    %329 = arith.addf %326, %328 : vector<8x128xf32>
    %330 = arith.mulf %329, %5 : vector<8x128xf32>
    %331 = math.tanh %330 : vector<8x128xf32>
    %cst_100 = arith.constant 5.000000e-01 : f32
    %332 = vector.broadcast %cst_100 : f32 to vector<8x128xf32>
    %333 = arith.mulf %332, %331 : vector<8x128xf32>
    %cst_101 = arith.constant 5.000000e-01 : f32
    %334 = vector.broadcast %cst_101 : f32 to vector<8x128xf32>
    %335 = arith.addf %334, %333 : vector<8x128xf32>
    %336 = arith.select %2, %331, %335 : vector<8x128xi1>, vector<8x128xf32>
    %337 = vector.extract_strided_slice %336 {offsets = [0, 0], sizes = [8, 32], strides = [1, 1]} : vector<8x128xf32> to vector<8x32xf32>
    %338 = vector.extract_strided_slice %336 {offsets = [0, 32], sizes = [8, 32], strides = [1, 1]} : vector<8x128xf32> to vector<8x32xf32>
    %339 = vector.extract_strided_slice %336 {offsets = [0, 64], sizes = [8, 32], strides = [1, 1]} : vector<8x128xf32> to vector<8x32xf32>
    %340 = vector.extract_strided_slice %336 {offsets = [0, 96], sizes = [8, 32], strides = [1, 1]} : vector<8x128xf32> to vector<8x32xf32>
    %341 = arith.mulf %338, %318 : vector<8x32xf32>
    %342 = arith.mulf %337, %340 : vector<8x32xf32>
    %343 = arith.addf %341, %342 : vector<8x32xf32>
    %344 = math.tanh %343 : vector<8x32xf32>
    %345 = arith.mulf %339, %344 : vector<8x32xf32>
    %346 = arith.index_cast %324 : i32 to index
    %c0_102 = arith.constant 0 : index
    %347 = vector.load %arg8[%346, %c0_102] : memref<64x32xf32, #tpu.memory_space<vmem>>, vector<8x32xf32>
    tpu.vector_store %arg8[%346, %c0_102], %345 {strides = array<i32>} : memref<64x32xf32, #tpu.memory_space<vmem>>, vector<8x32xf32>,
    %c5_i32_103 = arith.constant 5 : i32
    %c8_i32_104 = arith.constant 8 : i32
    %348 = arith.muli %c5_i32_103, %c8_i32_104 : i32
    %349 = tpu.assume_multiple %348, 8 : i32
    %350 = arith.index_cast %349 : i32 to index
    %c0_105 = arith.constant 0 : index
    %351 = vector.load %arg7[%350, %c0_105] : memref<64x128xf32, #tpu.memory_space<vmem>>, vector<8x128xf32>
    %352 = arith.truncf %345 : vector<8x32xf32> to vector<8x32xbf16>
    %cst_106 = arith.constant dense<0.000000e+00> : vector<8x128xf32>
    %353 = tpu.matmul %352, %11, %cst_106 {dimension_numbers = #tpu.dot_dimension_numbers<[1], [0], [0], [1], [0, 0, 1, 1], [], []>} : vector<8x32xbf16>, vector<32x128xbf16>, vector<8x128xf32> -> vector<8x128xf32>
    %354 = arith.addf %351, %353 : vector<8x128xf32>
    %355 = arith.mulf %354, %5 : vector<8x128xf32>
    %356 = math.tanh %355 : vector<8x128xf32>
    %cst_107 = arith.constant 5.000000e-01 : f32
    %357 = vector.broadcast %cst_107 : f32 to vector<8x128xf32>
    %358 = arith.mulf %357, %356 : vector<8x128xf32>
    %cst_108 = arith.constant 5.000000e-01 : f32
    %359 = vector.broadcast %cst_108 : f32 to vector<8x128xf32>
    %360 = arith.addf %359, %358 : vector<8x128xf32>
    %361 = arith.select %2, %356, %360 : vector<8x128xi1>, vector<8x128xf32>
    %362 = vector.extract_strided_slice %361 {offsets = [0, 0], sizes = [8, 32], strides = [1, 1]} : vector<8x128xf32> to vector<8x32xf32>
    %363 = vector.extract_strided_slice %361 {offsets = [0, 32], sizes = [8, 32], strides = [1, 1]} : vector<8x128xf32> to vector<8x32xf32>
    %364 = vector.extract_strided_slice %361 {offsets = [0, 64], sizes = [8, 32], strides = [1, 1]} : vector<8x128xf32> to vector<8x32xf32>
    %365 = vector.extract_strided_slice %361 {offsets = [0, 96], sizes = [8, 32], strides = [1, 1]} : vector<8x128xf32> to vector<8x32xf32>
    %366 = arith.mulf %363, %343 : vector<8x32xf32>
    %367 = arith.mulf %362, %365 : vector<8x32xf32>
    %368 = arith.addf %366, %367 : vector<8x32xf32>
    %369 = math.tanh %368 : vector<8x32xf32>
    %370 = arith.mulf %364, %369 : vector<8x32xf32>
    %371 = arith.index_cast %349 : i32 to index
    %c0_109 = arith.constant 0 : index
    %372 = vector.load %arg8[%371, %c0_109] : memref<64x32xf32, #tpu.memory_space<vmem>>, vector<8x32xf32>
    tpu.vector_store %arg8[%371, %c0_109], %370 {strides = array<i32>} : memref<64x32xf32, #tpu.memory_space<vmem>>, vector<8x32xf32>,
    %c6_i32_110 = arith.constant 6 : i32
    %c8_i32_111 = arith.constant 8 : i32
    %373 = arith.muli %c6_i32_110, %c8_i32_111 : i32
    %374 = tpu.assume_multiple %373, 8 : i32
    %375 = arith.index_cast %374 : i32 to index
    %c0_112 = arith.constant 0 : index
    %376 = vector.load %arg7[%375, %c0_112] : memref<64x128xf32, #tpu.memory_space<vmem>>, vector<8x128xf32>
    %377 = arith.truncf %370 : vector<8x32xf32> to vector<8x32xbf16>
    %cst_113 = arith.constant dense<0.000000e+00> : vector<8x128xf32>
    %378 = tpu.matmul %377, %11, %cst_113 {dimension_numbers = #tpu.dot_dimension_numbers<[1], [0], [0], [1], [0, 0, 1, 1], [], []>} : vector<8x32xbf16>, vector<32x128xbf16>, vector<8x128xf32> -> vector<8x128xf32>
    %379 = arith.addf %376, %378 : vector<8x128xf32>
    %380 = arith.mulf %379, %5 : vector<8x128xf32>
    %381 = math.tanh %380 : vector<8x128xf32>
    %cst_114 = arith.constant 5.000000e-01 : f32
    %382 = vector.broadcast %cst_114 : f32 to vector<8x128xf32>
    %383 = arith.mulf %382, %381 : vector<8x128xf32>
    %cst_115 = arith.constant 5.000000e-01 : f32
    %384 = vector.broadcast %cst_115 : f32 to vector<8x128xf32>
    %385 = arith.addf %384, %383 : vector<8x128xf32>
    %386 = arith.select %2, %381, %385 : vector<8x128xi1>, vector<8x128xf32>
    %387 = vector.extract_strided_slice %386 {offsets = [0, 0], sizes = [8, 32], strides = [1, 1]} : vector<8x128xf32> to vector<8x32xf32>
    %388 = vector.extract_strided_slice %386 {offsets = [0, 32], sizes = [8, 32], strides = [1, 1]} : vector<8x128xf32> to vector<8x32xf32>
    %389 = vector.extract_strided_slice %386 {offsets = [0, 64], sizes = [8, 32], strides = [1, 1]} : vector<8x128xf32> to vector<8x32xf32>
    %390 = vector.extract_strided_slice %386 {offsets = [0, 96], sizes = [8, 32], strides = [1, 1]} : vector<8x128xf32> to vector<8x32xf32>
    %391 = arith.mulf %388, %368 : vector<8x32xf32>
    %392 = arith.mulf %387, %390 : vector<8x32xf32>
    %393 = arith.addf %391, %392 : vector<8x32xf32>
    %394 = math.tanh %393 : vector<8x32xf32>
    %395 = arith.mulf %389, %394 : vector<8x32xf32>
    %396 = arith.index_cast %374 : i32 to index
    %c0_116 = arith.constant 0 : index
    %397 = vector.load %arg8[%396, %c0_116] : memref<64x32xf32, #tpu.memory_space<vmem>>, vector<8x32xf32>
    tpu.vector_store %arg8[%396, %c0_116], %395 {strides = array<i32>} : memref<64x32xf32, #tpu.memory_space<vmem>>, vector<8x32xf32>,
    %c7_i32_117 = arith.constant 7 : i32
    %c8_i32_118 = arith.constant 8 : i32
    %398 = arith.muli %c7_i32_117, %c8_i32_118 : i32
    %399 = tpu.assume_multiple %398, 8 : i32
    %400 = arith.index_cast %399 : i32 to index
    %c0_119 = arith.constant 0 : index
    %401 = vector.load %arg7[%400, %c0_119] : memref<64x128xf32, #tpu.memory_space<vmem>>, vector<8x128xf32>
    %402 = arith.truncf %395 : vector<8x32xf32> to vector<8x32xbf16>
    %cst_120 = arith.constant dense<0.000000e+00> : vector<8x128xf32>
    %403 = tpu.matmul %402, %11, %cst_120 {dimension_numbers = #tpu.dot_dimension_numbers<[1], [0], [0], [1], [0, 0, 1, 1], [], []>} : vector<8x32xbf16>, vector<32x128xbf16>, vector<8x128xf32> -> vector<8x128xf32>
    %404 = arith.addf %401, %403 : vector<8x128xf32>
    %405 = arith.mulf %404, %5 : vector<8x128xf32>
    %406 = math.tanh %405 : vector<8x128xf32>
    %cst_121 = arith.constant 5.000000e-01 : f32
    %407 = vector.broadcast %cst_121 : f32 to vector<8x128xf32>
    %408 = arith.mulf %407, %406 : vector<8x128xf32>
    %cst_122 = arith.constant 5.000000e-01 : f32
    %409 = vector.broadcast %cst_122 : f32 to vector<8x128xf32>
    %410 = arith.addf %409, %408 : vector<8x128xf32>
    %411 = arith.select %2, %406, %410 : vector<8x128xi1>, vector<8x128xf32>
    %412 = vector.extract_strided_slice %411 {offsets = [0, 0], sizes = [8, 32], strides = [1, 1]} : vector<8x128xf32> to vector<8x32xf32>
    %413 = vector.extract_strided_slice %411 {offsets = [0, 32], sizes = [8, 32], strides = [1, 1]} : vector<8x128xf32> to vector<8x32xf32>
    %414 = vector.extract_strided_slice %411 {offsets = [0, 64], sizes = [8, 32], strides = [1, 1]} : vector<8x128xf32> to vector<8x32xf32>
    %415 = vector.extract_strided_slice %411 {offsets = [0, 96], sizes = [8, 32], strides = [1, 1]} : vector<8x128xf32> to vector<8x32xf32>
    %416 = arith.mulf %413, %393 : vector<8x32xf32>
    %417 = arith.mulf %412, %415 : vector<8x32xf32>
    %418 = arith.addf %416, %417 : vector<8x32xf32>
    %419 = math.tanh %418 : vector<8x32xf32>
    %420 = arith.mulf %414, %419 : vector<8x32xf32>
    %421 = arith.index_cast %399 : i32 to index
    %c0_123 = arith.constant 0 : index
    %422 = vector.load %arg8[%421, %c0_123] : memref<64x32xf32, #tpu.memory_space<vmem>>, vector<8x32xf32>
    tpu.vector_store %arg8[%421, %c0_123], %420 {strides = array<i32>} : memref<64x32xf32, #tpu.memory_space<vmem>>, vector<8x32xf32>,
    %c8_i32_124 = arith.constant 8 : i32
    %c0_125 = arith.constant 0 : index
    %c0_126 = arith.constant 0 : index
    %423 = vector.load %arg8[%c0_125, %c0_126] : memref<64x32xf32, #tpu.memory_space<vmem>>, vector<64x32xf32>
    %cst_127 = arith.constant dense<0.000000e+00> : vector<64x128xf32>
    %424 = tpu.matmul %423, %9, %cst_127 {dimension_numbers = #tpu.dot_dimension_numbers<[1], [0], [0], [1], [0, 0, 1, 1], [], []>} : vector<64x32xf32>, vector<32x128xf32>, vector<64x128xf32> -> vector<64x128xf32>
    %425 = vector.broadcast %16 : vector<1x128xf32> to vector<64x128xf32>
    %426 = arith.addf %424, %425 : vector<64x128xf32>
    %c0_128 = arith.constant 0 : index
    %c0_129 = arith.constant 0 : index
    %427 = vector.load %arg5[%c0_128, %c0_129] : memref<64x128xf32, #tpu.memory_space<vmem>>, vector<64x128xf32>
    tpu.vector_store %arg5[%c0_128, %c0_129], %426 {strides = array<i32>} : memref<64x128xf32, #tpu.memory_space<vmem>>, vector<64x128xf32>,
    %428 = tpu.iota {dimensions = array<i32: 0>} : vector<64x128xi32>
    %c7_i32_130 = arith.constant 7 : i32
    %429 = vector.broadcast %c7_i32_130 : i32 to vector<64x128xi32>
    %430 = arith.andi %428, %429 : vector<64x128xi32>
    %c2_i32_131 = arith.constant 2 : i32
    %431 = vector.broadcast %c2_i32_131 : i32 to vector<64x128xi32>
    %432 = arith.cmpi slt, %430, %431 : vector<64x128xi32>
    %433 = arith.extui %432 : vector<64x128xi1> to vector<64x128xi32>
    %434 = arith.sitofp %433 : vector<64x128xi32> to vector<64x128xf32>
    %435 = arith.subf %426, %17 : vector<64x128xf32>
    %436 = arith.mulf %435, %434 : vector<64x128xf32>
    %437 = arith.mulf %436, %436 : vector<64x128xf32>
    %438 = vector.shape_cast %437 : vector<64x128xf32> to vector<1x64x128xf32>
    %cst_132 = arith.constant dense<0.000000e+00> : vector<1xf32>
    %439 = vector.multi_reduction <add>, %438, %cst_132 [1, 2] : vector<1x64x128xf32> to vector<1xf32>
    %440 = vector.shape_cast %439 : vector<1xf32> to vector<1x1x1xf32>
    %441 = vector.extract %440[0, 0, 0] : f32 from vector<1x1x1xf32>
    %442 = vector.broadcast %441 : f32 to vector<1x1xf32>
    %cst_133 = arith.constant 1.562500e-02 : f32
    %443 = vector.broadcast %cst_133 : f32 to vector<1x1xf32>
    %444 = arith.mulf %442, %443 : vector<1x1xf32>
    %445 = tpu.iota {dimensions = array<i32: 0>} : vector<8x16xi32>
    %c2_i32_134 = arith.constant 2 : i32
    %446 = vector.broadcast %c2_i32_134 : i32 to vector<8x16xi32>
    %447 = arith.cmpi slt, %445, %446 : vector<8x16xi32>
    %448 = arith.extui %447 : vector<8x16xi1> to vector<8x16xi32>
    %449 = arith.sitofp %448 : vector<8x16xi32> to vector<8x16xf32>
    %cst_135 = arith.constant 1.000000e+00 : f32
    %450 = vector.broadcast %cst_135 : f32 to vector<8x16xf32>
    %451 = arith.addf %450, %211 : vector<8x16xf32>
    %452 = arith.mulf %210, %210 : vector<8x16xf32>
    %453 = arith.subf %451, %452 : vector<8x16xf32>
    %454 = arith.mulf %214, %214 : vector<8x16xf32>
    %455 = arith.subf %453, %454 : vector<8x16xf32>
    %456 = arith.mulf %455, %449 : vector<8x16xf32>
    %457 = vector.shape_cast %456 : vector<8x16xf32> to vector<1x8x16xf32>
    %cst_136 = arith.constant dense<0.000000e+00> : vector<1xf32>
    %458 = vector.multi_reduction <add>, %457, %cst_136 [1, 2] : vector<1x8x16xf32> to vector<1xf32>
    %459 = vector.shape_cast %458 : vector<1xf32> to vector<1x1x1xf32>
    %460 = vector.extract %459[0, 0, 0] : f32 from vector<1x1x1xf32>
    %461 = vector.broadcast %460 : f32 to vector<1x1xf32>
    %cst_137 = arith.constant -2.500000e-01 : f32
    %462 = vector.broadcast %cst_137 : f32 to vector<1x1xf32>
    %463 = arith.mulf %462, %461 : vector<1x1xf32>
    %cst_138 = arith.constant 2.500000e-04 : f32
    %464 = vector.broadcast %cst_138 : f32 to vector<1x1xf32>
    %465 = arith.mulf %464, %463 : vector<1x1xf32>
    %466 = arith.addf %444, %465 : vector<1x1xf32>
    %467 = tpu.iota {dimensions = array<i32: 1>} : vector<1x128xi32>
    %c0_i32_139 = arith.constant 0 : i32
    %468 = vector.broadcast %c0_i32_139 : i32 to vector<1x128xi32>
    %469 = arith.cmpi eq, %467, %468 : vector<1x128xi32>
    %cst_140 = arith.constant 0.000000e+00 : f32
    %470 = vector.shape_cast %466 : vector<1x1xf32> to vector<1x1xf32>
    %471 = vector.broadcast %470 : vector<1x1xf32> to vector<1x128xf32>
    %472 = vector.broadcast %cst_140 : f32 to vector<1x128xf32>
    %473 = arith.select %469, %471, %472 : vector<1x128xi1>, vector<1x128xf32>
    %c1_i32_141 = arith.constant 1 : i32
    %474 = vector.broadcast %c1_i32_141 : i32 to vector<1x128xi32>
    %475 = arith.cmpi eq, %467, %474 : vector<1x128xi32>
    %cst_142 = arith.constant 0.000000e+00 : f32
    %476 = vector.shape_cast %444 : vector<1x1xf32> to vector<1x1xf32>
    %477 = vector.broadcast %476 : vector<1x1xf32> to vector<1x128xf32>
    %478 = vector.broadcast %cst_142 : f32 to vector<1x128xf32>
    %479 = arith.select %475, %477, %478 : vector<1x128xi1>, vector<1x128xf32>
    %480 = arith.addf %473, %479 : vector<1x128xf32>
    %c2_i32_143 = arith.constant 2 : i32
    %481 = vector.broadcast %c2_i32_143 : i32 to vector<1x128xi32>
    %482 = arith.cmpi eq, %467, %481 : vector<1x128xi32>
    %cst_144 = arith.constant 0.000000e+00 : f32
    %483 = vector.broadcast %cst_144 : f32 to vector<1x1xf32>
    %484 = arith.subf %483, %463 : vector<1x1xf32>
    %cst_145 = arith.constant 0.000000e+00 : f32
    %485 = vector.shape_cast %484 : vector<1x1xf32> to vector<1x1xf32>
    %486 = vector.broadcast %485 : vector<1x1xf32> to vector<1x128xf32>
    %487 = vector.broadcast %cst_145 : f32 to vector<1x128xf32>
    %488 = arith.select %482, %486, %487 : vector<1x128xi1>, vector<1x128xf32>
    %489 = arith.addf %480, %488 : vector<1x128xf32>
    %c0_146 = arith.constant 0 : index
    %c0_147 = arith.constant 0 : index
    %490 = vector.load %arg6[%c0_146, %c0_147] : memref<1x128xf32, #tpu.memory_space<vmem>>, vector<1x128xf32>
    tpu.vector_store %arg6[%c0_146, %c0_147], %489 {strides = array<i32>} : memref<1x128xf32, #tpu.memory_space<vmem>>, vector<1x128xf32>,
    return
  }
}

</mosaic_0001>

<llo_original>
// kernel: vae_lstm_forward.1
$region0: #{vae_lstm_forward.1}
  #allocation0 [shape = 'u32[]', space=smem, size = 0x4, offset = 0x4, fixed_abs, tag = 'smem constant byte address 0x4 - core index']
  #allocation1 [shape = 'u32[144,128]{1,0:T(1,128)}', space=vmem, size = 0x12000, scoped, tag = 'internal scratch']
  #allocation2 [shape = 'f32[64,128]{1,0:T(8,128)}', space=vmem, size = 0x8000, scoped, tag = 'scratch operand']
  #allocation3 [shape = 'f32[64,32]{1,0:T(8,128)}', space=vmem, size = 0x8000, scoped, tag = 'scratch operand']
  %s0 = inlined_call_operand.vmem [shape: f32[64,128], index: 0, kind: input, shape index: {}]
  %s1 = inlined_call_operand.vmem [shape: f32[208,128], index: 1, kind: input, shape index: {}]
  %s2 = inlined_call_operand.vmem [shape: bf16[64,128], index: 2, kind: input, shape index: {}]
  %s3 = inlined_call_operand.vmem [shape: f32[16,128], index: 3, kind: input, shape index: {}]
  %s4 = inlined_call_operand.vmem [shape: f32[64,8], index: 4, kind: input, shape index: {}]
  %s5 = inlined_call_operand.vmem [shape: f32[64,128], index: 5, kind: output, shape index: {0}]
  %s6 = inlined_call_operand.vmem [shape: f32[1,128], index: 6, kind: output, shape index: {1}]
  %7 = xla_tuple %s5, %s6
  %s8 = sld [smem:[#allocation0]]
  $region38: #{vae_lstm_forward.1} parent=0
    _
  %s10 = ssub.s32 1, %s8
  %s11 = scalar_select 0, %s10, %s8
  // Predicated region
  $region2: #{vae_lstm_forward.1} parent=0 // pred_check
    _
  $region3: #{vae_lstm_forward.1} parent=0 // pred_check_branch
    %13 = sbr.rel (0) target = $region5
  $region4: #{vae_lstm_forward.1} parent=0 // pred_region
    _
  $region5: #{vae_lstm_forward.1} parent=0 // pred_fallthru
    _
  // Predicated region
  $region6: #{vae_lstm_forward.1} parent=0 // pred_check
    _
  $region7: #{vae_lstm_forward.1} parent=0 // pred_check_branch
    %15 = sbr.rel (0) target = $region9
  $region8: #{vae_lstm_forward.1} parent=0 // pred_region
    _
  $region9: #{vae_lstm_forward.1} parent=0 // pred_fallthru
    _
  // Predicated region
  $region10: #{vae_lstm_forward.1} parent=0 // pred_check
    _
  $region11: #{vae_lstm_forward.1} parent=0 // pred_check_branch
    %17 = sbr.rel (0) target = $region13
  $region12: #{vae_lstm_forward.1} parent=0 // pred_region
    _
  $region13: #{vae_lstm_forward.1} parent=0 // pred_fallthru
    _
  // Predicated region
  $region14: #{vae_lstm_forward.1} parent=0 // pred_check
    _
  $region15: #{vae_lstm_forward.1} parent=0 // pred_check_branch
    %19 = sbr.rel (0) target = $region17
  $region16: #{vae_lstm_forward.1} parent=0 // pred_region
    _
  $region17: #{vae_lstm_forward.1} parent=0 // pred_fallthru
    _
  // Predicated region
  $region18: #{vae_lstm_forward.1} parent=0 // pred_check
    _
  $region19: #{vae_lstm_forward.1} parent=0 // pred_check_branch
    %21 = sbr.rel (0) target = $region21
  $region20: #{vae_lstm_forward.1} parent=0 // pred_region
    _
  $region21: #{vae_lstm_forward.1} parent=0 // pred_fallthru
    _
  %v23 = vlaneseq
  %v24 = vand.u32 %v23, 127
  %vm25 = vcmp.ge.s32.totalorder %v24, 96
  %v26 = vsel %vm25, 1.0, 0.5
  %v27 = vld [vmem:[%s1] sm:$0xff]
  %v28 = vld [vmem:[%s1 + $0x8] sm:$0xff]
  %v29 = vld [vmem:[%s1 + $0x10] sm:$0xff]
  %v30 = vld [vmem:[%s1 + $0x18] sm:$0xff]
  %v31 = vld [vmem:[%s1 + $0x20] sm:$0xff]
  %v32 = vld [vmem:[%s1 + $0x28] sm:$0xff]
  %v33 = vld [vmem:[%s1 + $0x30] sm:$0xff]
  %v34 = vld [vmem:[%s1 + $0x38] sm:$0xff]
  %v35 = vld [vmem:[%s1 + $0x40] sm:$0xff]
  %v36 = vld [vmem:[%s1 + $0x48] sm:$0xff]
  %v37 = vld [vmem:[%s1 + $0x50] sm:$0xff]
  %v38 = vld [vmem:[%s1 + $0x58] sm:$0xff]
  %v39 = vld [vmem:[%s1 + $0x60] sm:$0xff]
  %v40 = vld [vmem:[%s1 + $0x68] sm:$0xff]
  %v41 = vld [vmem:[%s1 + $0x70] sm:$0xff]
  %v42 = vld [vmem:[%s1 + $0x78] sm:$0xff]
  %v43 = vld [vmem:[%s1 + $0x80] sm:$0xff]
  %v44 = vld [vmem:[%s1 + $0x88] sm:$0xff]
  %v45 = vld [vmem:[%s1 + $0x90] sm:$0xff]
  %v46 = vld [vmem:[%s1 + $0x98] sm:$0xff]
  %v47 = vld [vmem:[%s1 + $0xa0] sm:$0xff]
  %v48 = vld [vmem:[%s1 + $0xa8] sm:$0xff]
  %v49 = vld [vmem:[%s1 + $0xb0] sm:$0xff]
  %v50 = vld [vmem:[%s1 + $0xb8] sm:$0xff]
  %v51 = vld [vmem:[%s1 + $0xc0] sm:$0xff]
  %v52 = vld [vmem:[%s1 + $0xc8] sm:$0xff]
  %v53 = vld [vmem:[%s2] sm:$0xf]
  %v54 = vld [vmem:[%s2 + $0x4] sm:$0xf]
  %v55 = vld [vmem:[%s2 + $0x8] sm:$0xf]
  %v56 = vld [vmem:[%s2 + $0xc] sm:$0xf]
  %v57 = vld [vmem:[%s2 + $0x10] sm:$0xf]
  %v58 = vld [vmem:[%s2 + $0x14] sm:$0xf]
  %v59 = vld [vmem:[%s2 + $0x18] sm:$0xf]
  %v60 = vld [vmem:[%s2 + $0x1c] sm:$0xf]
  %v61 = vld [vmem:[%s3] sm:$0xff]
  %v62 = vld [vmem:[%s3 + $0x8] sm:$0x1]
  %v63 = vld [vmem:[%s3 + $0x9] sm:$0x1]
  %v64 = vld [vmem:[%s3 + $0xa] sm:$0x1]
  %v65 = vld [vmem:[%s3 + $0xb] sm:$0x1]
  %v66 = vld [vmem:[%s0] sm:$0xff]
  %v67 = vld [vmem:[%s0 + $0x8] sm:$0xff]
  %v68 = vld [vmem:[%s0 + $0x10] sm:$0xff]
  %v69 = vld [vmem:[%s0 + $0x18] sm:$0xff]
  %v70 = vld [vmem:[%s0 + $0x20] sm:$0xff]
  %v71 = vld [vmem:[%s0 + $0x28] sm:$0xff]
  %v72 = vld [vmem:[%s0 + $0x30] sm:$0xff]
  %v73 = vld [vmem:[%s0 + $0x38] sm:$0xff]
  %v74 = vlaneseq
  %v75 = vshrl.u32 %v74, 7
  %v76 = vsub.s32 0, %v75
  %v77 = vrot.slane %v62, %v76
  %78 = vmatprep.subr.mxu0 0.0
  %79 = vmatpush1.msra.mxu0 %v42
  %80 = vmatprep.subr.mxu0 0.0
  %81 = vmatpush1.msra.mxu0 %v41
  %82 = vmatprep.subr.mxu0 0.0
  %83 = vmatpush1.msra.mxu0 %v40
  %84 = vmatprep.subr.mxu0 0.0
  %85 = vmatpush1.msra.mxu0 %v39
  %86 = vmatprep.subr.mxu0 0.0
  %87 = vmatpush1.msra.mxu0 %v38
  %88 = vmatprep.subr.mxu0 0.0
  %89 = vmatpush1.msra.mxu0 %v37
  %90 = vmatprep.subr.mxu0 0.0
  %91 = vmatpush1.msra.mxu0 %v36
  %92 = vmatprep.subr.mxu0 0.0
  %93 = vmatpush1.msra.mxu0 %v35
  %94 = vmatprep.subr.mxu0 0.0
  %95 = vmatpush1.msra.mxu0 %v34
  %96 = vmatprep.subr.mxu0 0.0
  %97 = vmatpush1.msra.mxu0 %v33
  %98 = vmatprep.subr.mxu0 0.0
  %99 = vmatpush1.msra.mxu0 %v32
  %100 = vmatprep.subr.mxu0 0.0
  %101 = vmatpush1.msra.mxu0 %v31
  %102 = vmatprep.subr.mxu0 0.0
  %103 = vmatpush1.msra.mxu0 %v30
  %104 = vmatprep.subr.mxu0 0.0
  %105 = vmatpush1.msra.mxu0 %v29
  %106 = vmatprep.subr.mxu0 0.0
  %107 = vmatpush1.msra.mxu0 %v28
  %108 = vmatprep.subr.mxu0 0.0
  %109 = vmatpush1.msra.mxu0 %v27
  %110 = vmatprep.subr.mxu0 0.0
  %111 = vmatpush2.msra.mxu0 0.0
  %112 = vmatprep.subr.mxu0 0.0
  %113 = vmatpush2.msra.mxu0 0.0
  %114 = vmatprep.subr.mxu0 0.0
  %115 = vmatpush2.msra.mxu0 0.0
  %116 = vmatprep.subr.mxu0 0.0
  %117 = vmatpush2.msra.mxu0 0.0
  %118 = vmatprep.subr.mxu0 0.0
  %119 = vmatpush2.msra.mxu0 0.0
  %120 = vmatprep.subr.mxu0 0.0
  %121 = vmatpush2.msra.mxu0 0.0
  %122 = vmatprep.subr.mxu0 0.0
  %123 = vmatpush2.msra.mxu0 0.0
  %124 = vmatprep.subr.mxu0 0.0
  %125 = vmatpush2.msra.mxu0 0.0
  %126 = vmatprep.subr.mxu0 0.0
  %127 = vmatpush2.msra.mxu0 0.0
  %128 = vmatprep.subr.mxu0 0.0
  %129 = vmatpush2.msra.mxu0 0.0
  %130 = vmatprep.subr.mxu0 0.0
  %131 = vmatpush2.msra.mxu0 0.0
  %132 = vmatprep.subr.mxu0 0.0
  %133 = vmatpush2.msra.mxu0 0.0
  %134 = vmatprep.subr.mxu0 0.0
  %135 = vmatpush2.msra.mxu0 0.0
  %136 = vmatprep.subr.mxu0 0.0
  %137 = vmatpush2.msra.mxu0 0.0
  %138 = vmatprep.subr.mxu0 0.0
  %139 = vmatpush2.msra.mxu0 0.0
  %140 = vmatprep.subr.mxu0 0.0
  %141 = vmatpush2.msra.mxu0 0.0
  %142 = vmatprep.mubr.f32.mxu0 0.0
  %143 = vmatmul.mubr.f32.gmra.mxu0 %v66
  %v144 = vpop.f32.mrf.mxu0
  %v145 = vadd.f32 %v77, %v144
  %v146 = vpop.f32.mrf.mxu0
  %147 = vmatprep.mubr.f32.mxu0 0.0
  %148 = vmatmul.mubr.f32.gmra.mxu0 %v67
  %v149 = vpop.f32.mrf.mxu0
  %v150 = vadd.f32 %v77, %v149
  %v151 = vpop.f32.mrf.mxu0
  %152 = vmatprep.mubr.f32.mxu0 0.0
  %153 = vmatmul.mubr.f32.gmra.mxu0 %v68
  %v154 = vpop.f32.mrf.mxu0
  %v155 = vadd.f32 %v77, %v154
  %v156 = vpop.f32.mrf.mxu0
  %157 = vmatprep.mubr.f32.mxu0 0.0
  %158 = vmatmul.mubr.f32.gmra.mxu0 %v69
  %v159 = vpop.f32.mrf.mxu0
  %v160 = vadd.f32 %v77, %v159
  %v161 = vpop.f32.mrf.mxu0
  %162 = vmatprep.mubr.f32.mxu0 0.0
  %163 = vmatmul.mubr.f32.gmra.mxu0 %v70
  %v164 = vpop.f32.mrf.mxu0
  %v165 = vadd.f32 %v77, %v164
  %v166 = vpop.f32.mrf.mxu0
  %167 = vmatprep.mubr.f32.mxu0 0.0
  %168 = vmatmul.mubr.f32.gmra.mxu0 %v71
  %v169 = vpop.f32.mrf.mxu0
  %v170 = vadd.f32 %v77, %v169
  %v171 = vpop.f32.mrf.mxu0
  %172 = vmatprep.mubr.f32.mxu0 0.0
  %173 = vmatmul.mubr.f32.gmra.mxu0 %v72
  %v174 = vpop.f32.mrf.mxu0
  %v175 = vadd.f32 %v77, %v174
  %v176 = vpop.f32.mrf.mxu0
  %177 = vmatprep.mubr.f32.mxu0 0.0
  %178 = vmatmul.mubr.f32.gmra.mxu0 %v73
  %v179 = vpop.f32.mrf.mxu0
  %v180 = vadd.f32 %v77, %v179
  %v181 = vpop.f32.mrf.mxu0
  %182 = vdwg.mxu0
  %183 = vst [vmem:[#allocation2] sm:$0xff] %v145
  %184 = vst [vmem:[#allocation2 + $0x8] sm:$0xff] %v150
  %185 = vst [vmem:[#allocation2 + $0x10] sm:$0xff] %v155
  %186 = vst [vmem:[#allocation2 + $0x18] sm:$0xff] %v160
  %187 = vst [vmem:[#allocation2 + $0x20] sm:$0xff] %v165
  %188 = vst [vmem:[#allocation2 + $0x28] sm:$0xff] %v170
  %189 = vst [vmem:[#allocation2 + $0x30] sm:$0xff] %v175
  %190 = vst [vmem:[#allocation2 + $0x38] sm:$0xff] %v180
  %v191 = vld [vmem:[#allocation2] sm:$0xff]
  %v196 = vunpack.c.l.b16 %v53
  %v197 = vunpack.c.l.b16 %v54
  %v198 = vunpack.c.l.b16 %v55
  %v199 = vunpack.c.l.b16 %v56
  %v200 = vpack.c.b16 %v197, %v196
  %v201 = vpack.c.b16 %v199, %v198
  %vm204 = vcmask 261120
  %v206 = vsel %vm204, 0, 0
  %208 = vmatprep.subr.bf16.mxu0 0
  %209 = vmatpush1.bf16.msra.mxu0 0
  %210 = vmatprep.subr.bf16.mxu0 0
  %211 = vmatpush1.bf16.msra.mxu0 0
  %212 = vmatprep.subr.bf16.mxu0 0
  %213 = vmatpush1.bf16.msra.mxu0 0
  %214 = vmatprep.subr.bf16.mxu0 0
  %215 = vmatpush1.bf16.msra.mxu0 0
  %216 = vmatprep.subr.bf16.mxu0 0
  %217 = vmatpush1.bf16.msra.mxu0 0
  %218 = vmatprep.subr.bf16.mxu0 0
  %219 = vmatpush1.bf16.msra.mxu0 0
  %220 = vmatprep.subr.bf16.mxu0 0
  %221 = vmatpush1.bf16.msra.mxu0 %v201
  %222 = vmatprep.subr.bf16.mxu0 0
  %223 = vmatpush1.bf16.msra.mxu0 %v200
  %224 = vmatprep.subr.bf16.mxu0 0
  %225 = vmatpush2.bf16.msra.mxu0 0
  %226 = vmatprep.subr.bf16.mxu0 0
  %227 = vmatpush2.bf16.msra.mxu0 0
  %228 = vmatprep.subr.bf16.mxu0 0
  %229 = vmatpush2.bf16.msra.mxu0 0
  %230 = vmatprep.subr.bf16.mxu0 0
  %231 = vmatpush2.bf16.msra.mxu0 0
  %232 = vmatprep.subr.bf16.mxu0 0
  %233 = vmatpush2.bf16.msra.mxu0 0
  %234 = vmatprep.subr.bf16.mxu0 0
  %235 = vmatpush2.bf16.msra.mxu0 0
  %236 = vmatprep.subr.bf16.mxu0 0
  %237 = vmatpush2.bf16.msra.mxu0 0
  %238 = vmatprep.subr.bf16.mxu0 0
  %239 = vmatpush2.bf16.msra.mxu0 0
  %240 = vmatprep.mubr.bf16.mxu0 0
  %241 = vmatmul.mubr.bf16.gmra.mxu0 %v206
  %v242 = vpop.f32.mrf.mxu0
  %v243 = vadd.f32 0.0, %v242
  %v244 = vpop.f32.mrf.mxu0
  %v245 = vpop.f32.mrf.mxu0
  %v246 = vpop.f32.mrf.mxu0
  %247 = vdwg.mxu0
  %v248 = vadd.f32 %v191, %v243
  %v249 = vmul.f32 %v248, %v26
  %v250 = vtanh.pop %v249
  %v251 = vmul.f32 %v250, 0.5
  %v252 = vadd.f32 %v251, 0.5
  %v253 = vsel %vm25, %v250, %v252
  %v254 = vmul.f32 %v253, 0.0
  %256 = vrot.lane.b32.xlu0 %v253, 32
  %v257 = vpop.permute.xlu0 %256
  %v259 = vmul.f32 %v253, %v257
  %261 = vrot.lane.b32.xlu0 %v259, 32
  %v262 = vpop.permute.xlu0 %261
  %v264 = vadd.f32 %v254, %v262
  %v265 = vtanh.pop %v264
  %267 = vrot.lane.b32.xlu0 %v265, 32
  %v268 = vpop.permute.xlu0 %267
  %v270 = vmul.f32 %v253, %v268
  %s271 = scalar_lea.vmem [#allocation2], 8
  %v272 = vld [vmem:[%s271] sm:$0xff]
  %v273 = vpack.c.bf16 %v270, %v270
  %275 = vrot.lane.b32.xlu0 %v273, 64
  %v276 = vpop.permute.xlu0 %275
  %v278 = vsel %vm204, %v276, 0
  %280 = vmatprep.subr.bf16.mxu0 0
  %281 = vmatpush1.bf16.msra.mxu0 0
  %282 = vmatprep.subr.bf16.mxu0 0
  %283 = vmatpush1.bf16.msra.mxu0 0
  %284 = vmatprep.subr.bf16.mxu0 0
  %285 = vmatpush1.bf16.msra.mxu0 0
  %286 = vmatprep.subr.bf16.mxu0 0
  %287 = vmatpush1.bf16.msra.mxu0 0
  %288 = vmatprep.subr.bf16.mxu0 0
  %289 = vmatpush1.bf16.msra.mxu0 0
  %290 = vmatprep.subr.bf16.mxu0 0
  %291 = vmatpush1.bf16.msra.mxu0 0
  %292 = vmatprep.subr.bf16.mxu0 0
  %293 = vmatpush1.bf16.msra.mxu0 %v201
  %294 = vmatprep.subr.bf16.mxu0 0
  %295 = vmatpush1.bf16.msra.mxu0 %v200
  %296 = vmatprep.subr.bf16.mxu0 0
  %297 = vmatpush2.bf16.msra.mxu0 0
  %298 = vmatprep.subr.bf16.mxu0 0
  %299 = vmatpush2.bf16.msra.mxu0 0
  %300 = vmatprep.subr.bf16.mxu0 0
  %301 = vmatpush2.bf16.msra.mxu0 0
  %302 = vmatprep.subr.bf16.mxu0 0
  %303 = vmatpush2.bf16.msra.mxu0 0
  %304 = vmatprep.subr.bf16.mxu0 0
  %305 = vmatpush2.bf16.msra.mxu0 0
  %306 = vmatprep.subr.bf16.mxu0 0
  %307 = vmatpush2.bf16.msra.mxu0 0
  %308 = vmatprep.subr.bf16.mxu0 0
  %309 = vmatpush2.bf16.msra.mxu0 0
  %310 = vmatprep.subr.bf16.mxu0 0
  %311 = vmatpush2.bf16.msra.mxu0 0
  %312 = vmatprep.mubr.bf16.mxu0 0
  %313 = vmatmul.mubr.bf16.gmra.mxu0 %v278
  %v314 = vpop.f32.mrf.mxu0
  %v315 = vadd.f32 0.0, %v314
  %v316 = vpop.f32.mrf.mxu0
  %v317 = vpop.f32.mrf.mxu0
  %v318 = vpop.f32.mrf.mxu0
  %319 = vdwg.mxu0
  %v320 = vadd.f32 %v272, %v315
  %v321 = vmul.f32 %v320, %v26
  %v322 = vtanh.pop %v321
  %v323 = vmul.f32 %v322, 0.5
  %v324 = vadd.f32 %v323, 0.5
  %v325 = vsel %vm25, %v322, %v324
  %v326 = vmul.f32 %v325, %v264
  %328 = vrot.lane.b32.xlu0 %v325, 32
  %v329 = vpop.permute.xlu0 %328
  %v331 = vmul.f32 %v325, %v329
  %333 = vrot.lane.b32.xlu0 %v331, 32
  %v334 = vpop.permute.xlu0 %333
  %v336 = vadd.f32 %v326, %v334
  %v337 = vtanh.pop %v336
  %339 = vrot.lane.b32.xlu0 %v337, 32
  %v340 = vpop.permute.xlu0 %339
  %v342 = vmul.f32 %v325, %v340
  %s343 = scalar_lea.vmem [#allocation2], 16
  %v344 = vld [vmem:[%s343] sm:$0xff]
  %v345 = vpack.c.bf16 %v342, %v342
  %347 = vrot.lane.b32.xlu0 %v345, 64
  %v348 = vpop.permute.xlu0 %347
  %v350 = vsel %vm204, %v348, 0
  %352 = vmatprep.subr.bf16.mxu0 0
  %353 = vmatpush1.bf16.msra.mxu0 0
  %354 = vmatprep.subr.bf16.mxu0 0
  %355 = vmatpush1.bf16.msra.mxu0 0
  %356 = vmatprep.subr.bf16.mxu0 0
  %357 = vmatpush1.bf16.msra.mxu0 0
  %358 = vmatprep.subr.bf16.mxu0 0
  %359 = vmatpush1.bf16.msra.mxu0 0
  %360 = vmatprep.subr.bf16.mxu0 0
  %361 = vmatpush1.bf16.msra.mxu0 0
  %362 = vmatprep.subr.bf16.mxu0 0
  %363 = vmatpush1.bf16.msra.mxu0 0
  %364 = vmatprep.subr.bf16.mxu0 0
  %365 = vmatpush1.bf16.msra.mxu0 %v201
  %366 = vmatprep.subr.bf16.mxu0 0
  %367 = vmatpush1.bf16.msra.mxu0 %v200
  %368 = vmatprep.subr.bf16.mxu0 0
  %369 = vmatpush2.bf16.msra.mxu0 0
  %370 = vmatprep.subr.bf16.mxu0 0
  %371 = vmatpush2.bf16.msra.mxu0 0
  %372 = vmatprep.subr.bf16.mxu0 0
  %373 = vmatpush2.bf16.msra.mxu0 0
  %374 = vmatprep.subr.bf16.mxu0 0
  %375 = vmatpush2.bf16.msra.mxu0 0
  %376 = vmatprep.subr.bf16.mxu0 0
  %377 = vmatpush2.bf16.msra.mxu0 0
  %378 = vmatprep.subr.bf16.mxu0 0
  %379 = vmatpush2.bf16.msra.mxu0 0
  %380 = vmatprep.subr.bf16.mxu0 0
  %381 = vmatpush2.bf16.msra.mxu0 0
  %382 = vmatprep.subr.bf16.mxu0 0
  %383 = vmatpush2.bf16.msra.mxu0 0
  %384 = vmatprep.mubr.bf16.mxu0 0
  %385 = vmatmul.mubr.bf16.gmra.mxu0 %v350
  %v386 = vpop.f32.mrf.mxu0
  %v387 = vadd.f32 0.0, %v386
  %v388 = vpop.f32.mrf.mxu0
  %v389 = vpop.f32.mrf.mxu0
  %v390 = vpop.f32.mrf.mxu0
  %391 = vdwg.mxu0
  %v392 = vadd.f32 %v344, %v387
  %v393 = vmul.f32 %v392, %v26
  %v394 = vtanh.pop %v393
  %v395 = vmul.f32 %v394, 0.5
  %v396 = vadd.f32 %v395, 0.5
  %v397 = vsel %vm25, %v394, %v396
  %v398 = vmul.f32 %v397, %v336
  %400 = vrot.lane.b32.xlu0 %v397, 32
  %v401 = vpop.permute.xlu0 %400
  %v403 = vmul.f32 %v397, %v401
  %405 = vrot.lane.b32.xlu0 %v403, 32
  %v406 = vpop.permute.xlu0 %405
  %v408 = vadd.f32 %v398, %v406
  %v409 = vtanh.pop %v408
  %411 = vrot.lane.b32.xlu0 %v409, 32
  %v412 = vpop.permute.xlu0 %411
  %v414 = vmul.f32 %v397, %v412
  %s415 = scalar_lea.vmem [#allocation2], 24
  %v416 = vld [vmem:[%s415] sm:$0xff]
  %v417 = vpack.c.bf16 %v414, %v414
  %419 = vrot.lane.b32.xlu0 %v417, 64
  %v420 = vpop.permute.xlu0 %419
  %v422 = vsel %vm204, %v420, 0
  %424 = vmatprep.subr.bf16.mxu0 0
  %425 = vmatpush1.bf16.msra.mxu0 0
  %426 = vmatprep.subr.bf16.mxu0 0
  %427 = vmatpush1.bf16.msra.mxu0 0
  %428 = vmatprep.subr.bf16.mxu0 0
  %429 = vmatpush1.bf16.msra.mxu0 0
  %430 = vmatprep.subr.bf16.mxu0 0
  %431 = vmatpush1.bf16.msra.mxu0 0
  %432 = vmatprep.subr.bf16.mxu0 0
  %433 = vmatpush1.bf16.msra.mxu0 0
  %434 = vmatprep.subr.bf16.mxu0 0
  %435 = vmatpush1.bf16.msra.mxu0 0
  %436 = vmatprep.subr.bf16.mxu0 0
  %437 = vmatpush1.bf16.msra.mxu0 %v201
  %438 = vmatprep.subr.bf16.mxu0 0
  %439 = vmatpush1.bf16.msra.mxu0 %v200
  %440 = vmatprep.subr.bf16.mxu0 0
  %441 = vmatpush2.bf16.msra.mxu0 0
  %442 = vmatprep.subr.bf16.mxu0 0
  %443 = vmatpush2.bf16.msra.mxu0 0
  %444 = vmatprep.subr.bf16.mxu0 0
  %445 = vmatpush2.bf16.msra.mxu0 0
  %446 = vmatprep.subr.bf16.mxu0 0
  %447 = vmatpush2.bf16.msra.mxu0 0
  %448 = vmatprep.subr.bf16.mxu0 0
  %449 = vmatpush2.bf16.msra.mxu0 0
  %450 = vmatprep.subr.bf16.mxu0 0
  %451 = vmatpush2.bf16.msra.mxu0 0
  %452 = vmatprep.subr.bf16.mxu0 0
  %453 = vmatpush2.bf16.msra.mxu0 0
  %454 = vmatprep.subr.bf16.mxu0 0
  %455 = vmatpush2.bf16.msra.mxu0 0
  %456 = vmatprep.mubr.bf16.mxu0 0
  %457 = vmatmul.mubr.bf16.gmra.mxu0 %v422
  %v458 = vpop.f32.mrf.mxu0
  %v459 = vadd.f32 0.0, %v458
  %v460 = vpop.f32.mrf.mxu0
  %v461 = vpop.f32.mrf.mxu0
  %v462 = vpop.f32.mrf.mxu0
  %463 = vdwg.mxu0
  %v464 = vadd.f32 %v416, %v459
  %v465 = vmul.f32 %v464, %v26
  %v466 = vtanh.pop %v465
  %v467 = vmul.f32 %v466, 0.5
  %v468 = vadd.f32 %v467, 0.5
  %v469 = vsel %vm25, %v466, %v468
  %v470 = vmul.f32 %v469, %v408
  %472 = vrot.lane.b32.xlu0 %v469, 32
  %v473 = vpop.permute.xlu0 %472
  %v475 = vmul.f32 %v469, %v473
  %477 = vrot.lane.b32.xlu0 %v475, 32
  %v478 = vpop.permute.xlu0 %477
  %v480 = vadd.f32 %v470, %v478
  %v481 = vtanh.pop %v480
  %483 = vrot.lane.b32.xlu0 %v481, 32
  %v484 = vpop.permute.xlu0 %483
  %v486 = vmul.f32 %v469, %v484
  %s487 = scalar_lea.vmem [#allocation2], 32
  %v488 = vld [vmem:[%s487] sm:$0xff]
  %v489 = vpack.c.bf16 %v486, %v486
  %491 = vrot.lane.b32.xlu0 %v489, 64
  %v492 = vpop.permute.xlu0 %491
  %v494 = vsel %vm204, %v492, 0
  %496 = vmatprep.subr.bf16.mxu0 0
  %497 = vmatpush1.bf16.msra.mxu0 0
  %498 = vmatprep.subr.bf16.mxu0 0
  %499 = vmatpush1.bf16.msra.mxu0 0
  %500 = vmatprep.subr.bf16.mxu0 0
  %501 = vmatpush1.bf16.msra.mxu0 0
  %502 = vmatprep.subr.bf16.mxu0 0
  %503 = vmatpush1.bf16.msra.mxu0 0
  %504 = vmatprep.subr.bf16.mxu0 0
  %505 = vmatpush1.bf16.msra.mxu0 0
  %506 = vmatprep.subr.bf16.mxu0 0
  %507 = vmatpush1.bf16.msra.mxu0 0
  %508 = vmatprep.subr.bf16.mxu0 0
  %509 = vmatpush1.bf16.msra.mxu0 %v201
  %510 = vmatprep.subr.bf16.mxu0 0
  %511 = vmatpush1.bf16.msra.mxu0 %v200
  %512 = vmatprep.subr.bf16.mxu0 0
  %513 = vmatpush2.bf16.msra.mxu0 0
  %514 = vmatprep.subr.bf16.mxu0 0
  %515 = vmatpush2.bf16.msra.mxu0 0
  %516 = vmatprep.subr.bf16.mxu0 0
  %517 = vmatpush2.bf16.msra.mxu0 0
  %518 = vmatprep.subr.bf16.mxu0 0
  %519 = vmatpush2.bf16.msra.mxu0 0
  %520 = vmatprep.subr.bf16.mxu0 0
  %521 = vmatpush2.bf16.msra.mxu0 0
  %522 = vmatprep.subr.bf16.mxu0 0
  %523 = vmatpush2.bf16.msra.mxu0 0
  %524 = vmatprep.subr.bf16.mxu0 0
  %525 = vmatpush2.bf16.msra.mxu0 0
  %526 = vmatprep.subr.bf16.mxu0 0
  %527 = vmatpush2.bf16.msra.mxu0 0
  %528 = vmatprep.mubr.bf16.mxu0 0
  %529 = vmatmul.mubr.bf16.gmra.mxu0 %v494
  %v530 = vpop.f32.mrf.mxu0
  %v531 = vadd.f32 0.0, %v530
  %v532 = vpop.f32.mrf.mxu0
  %v533 = vpop.f32.mrf.mxu0
  %v534 = vpop.f32.mrf.mxu0
  %535 = vdwg.mxu0
  %v536 = vadd.f32 %v488, %v531
  %v537 = vmul.f32 %v536, %v26
  %v538 = vtanh.pop %v537
  %v539 = vmul.f32 %v538, 0.5
  %v540 = vadd.f32 %v539, 0.5
  %v541 = vsel %vm25, %v538, %v540
  %v542 = vmul.f32 %v541, %v480
  %544 = vrot.lane.b32.xlu0 %v541, 32
  %v545 = vpop.permute.xlu0 %544
  %v547 = vmul.f32 %v541, %v545
  %549 = vrot.lane.b32.xlu0 %v547, 32
  %v550 = vpop.permute.xlu0 %549
  %v552 = vadd.f32 %v542, %v550
  %v553 = vtanh.pop %v552
  %555 = vrot.lane.b32.xlu0 %v553, 32
  %v556 = vpop.permute.xlu0 %555
  %v558 = vmul.f32 %v541, %v556
  %s559 = scalar_lea.vmem [#allocation2], 40
  %v560 = vld [vmem:[%s559] sm:$0xff]
  %v561 = vpack.c.bf16 %v558, %v558
  %563 = vrot.lane.b32.xlu0 %v561, 64
  %v564 = vpop.permute.xlu0 %563
  %v566 = vsel %vm204, %v564, 0
  %568 = vmatprep.subr.bf16.mxu0 0
  %569 = vmatpush1.bf16.msra.mxu0 0
  %570 = vmatprep.subr.bf16.mxu0 0
  %571 = vmatpush1.bf16.msra.mxu0 0
  %572 = vmatprep.subr.bf16.mxu0 0
  %573 = vmatpush1.bf16.msra.mxu0 0
  %574 = vmatprep.subr.bf16.mxu0 0
  %575 = vmatpush1.bf16.msra.mxu0 0
  %576 = vmatprep.subr.bf16.mxu0 0
  %577 = vmatpush1.bf16.msra.mxu0 0
  %578 = vmatprep.subr.bf16.mxu0 0
  %579 = vmatpush1.bf16.msra.mxu0 0
  %580 = vmatprep.subr.bf16.mxu0 0
  %581 = vmatpush1.bf16.msra.mxu0 %v201
  %582 = vmatprep.subr.bf16.mxu0 0
  %583 = vmatpush1.bf16.msra.mxu0 %v200
  %584 = vmatprep.subr.bf16.mxu0 0
  %585 = vmatpush2.bf16.msra.mxu0 0
  %586 = vmatprep.subr.bf16.mxu0 0
  %587 = vmatpush2.bf16.msra.mxu0 0
  %588 = vmatprep.subr.bf16.mxu0 0
  %589 = vmatpush2.bf16.msra.mxu0 0
  %590 = vmatprep.subr.bf16.mxu0 0
  %591 = vmatpush2.bf16.msra.mxu0 0
  %592 = vmatprep.subr.bf16.mxu0 0
  %593 = vmatpush2.bf16.msra.mxu0 0
  %594 = vmatprep.subr.bf16.mxu0 0
  %595 = vmatpush2.bf16.msra.mxu0 0
  %596 = vmatprep.subr.bf16.mxu0 0
  %597 = vmatpush2.bf16.msra.mxu0 0
  %598 = vmatprep.subr.bf16.mxu0 0
  %599 = vmatpush2.bf16.msra.mxu0 0
  %600 = vmatprep.mubr.bf16.mxu0 0
  %601 = vmatmul.mubr.bf16.gmra.mxu0 %v566
  %v602 = vpop.f32.mrf.mxu0
  %v603 = vadd.f32 0.0, %v602
  %v604 = vpop.f32.mrf.mxu0
  %v605 = vpop.f32.mrf.mxu0
  %v606 = vpop.f32.mrf.mxu0
  %607 = vdwg.mxu0
  %v608 = vadd.f32 %v560, %v603
  %v609 = vmul.f32 %v608, %v26
  %v610 = vtanh.pop %v609
  %v611 = vmul.f32 %v610, 0.5
  %v612 = vadd.f32 %v611, 0.5
  %v613 = vsel %vm25, %v610, %v612
  %v614 = vmul.f32 %v613, %v552
  %616 = vrot.lane.b32.xlu0 %v613, 32
  %v617 = vpop.permute.xlu0 %616
  %v619 = vmul.f32 %v613, %v617
  %621 = vrot.lane.b32.xlu0 %v619, 32
  %v622 = vpop.permute.xlu0 %621
  %v624 = vadd.f32 %v614, %v622
  %v625 = vtanh.pop %v624
  %627 = vrot.lane.b32.xlu0 %v625, 32
  %v628 = vpop.permute.xlu0 %627
  %v630 = vmul.f32 %v613, %v628
  %s631 = scalar_lea.vmem [#allocation2], 48
  %v632 = vld [vmem:[%s631] sm:$0xff]
  %v633 = vpack.c.bf16 %v630, %v630
  %635 = vrot.lane.b32.xlu0 %v633, 64
  %v636 = vpop.permute.xlu0 %635
  %v638 = vsel %vm204, %v636, 0
  %640 = vmatprep.subr.bf16.mxu0 0
  %641 = vmatpush1.bf16.msra.mxu0 0
  %642 = vmatprep.subr.bf16.mxu0 0
  %643 = vmatpush1.bf16.msra.mxu0 0
  %644 = vmatprep.subr.bf16.mxu0 0
  %645 = vmatpush1.bf16.msra.mxu0 0
  %646 = vmatprep.subr.bf16.mxu0 0
  %647 = vmatpush1.bf16.msra.mxu0 0
  %648 = vmatprep.subr.bf16.mxu0 0
  %649 = vmatpush1.bf16.msra.mxu0 0
  %650 = vmatprep.subr.bf16.mxu0 0
  %651 = vmatpush1.bf16.msra.mxu0 0
  %652 = vmatprep.subr.bf16.mxu0 0
  %653 = vmatpush1.bf16.msra.mxu0 %v201
  %654 = vmatprep.subr.bf16.mxu0 0
  %655 = vmatpush1.bf16.msra.mxu0 %v200
  %656 = vmatprep.subr.bf16.mxu0 0
  %657 = vmatpush2.bf16.msra.mxu0 0
  %658 = vmatprep.subr.bf16.mxu0 0
  %659 = vmatpush2.bf16.msra.mxu0 0
  %660 = vmatprep.subr.bf16.mxu0 0
  %661 = vmatpush2.bf16.msra.mxu0 0
  %662 = vmatprep.subr.bf16.mxu0 0
  %663 = vmatpush2.bf16.msra.mxu0 0
  %664 = vmatprep.subr.bf16.mxu0 0
  %665 = vmatpush2.bf16.msra.mxu0 0
  %666 = vmatprep.subr.bf16.mxu0 0
  %667 = vmatpush2.bf16.msra.mxu0 0
  %668 = vmatprep.subr.bf16.mxu0 0
  %669 = vmatpush2.bf16.msra.mxu0 0
  %670 = vmatprep.subr.bf16.mxu0 0
  %671 = vmatpush2.bf16.msra.mxu0 0
  %672 = vmatprep.mubr.bf16.mxu0 0
  %673 = vmatmul.mubr.bf16.gmra.mxu0 %v638
  %v674 = vpop.f32.mrf.mxu0
  %v675 = vadd.f32 0.0, %v674
  %v676 = vpop.f32.mrf.mxu0
  %v677 = vpop.f32.mrf.mxu0
  %v678 = vpop.f32.mrf.mxu0
  %679 = vdwg.mxu0
  %v680 = vadd.f32 %v632, %v675
  %v681 = vmul.f32 %v680, %v26
  %v682 = vtanh.pop %v681
  %v683 = vmul.f32 %v682, 0.5
  %v684 = vadd.f32 %v683, 0.5
  %v685 = vsel %vm25, %v682, %v684
  %v686 = vmul.f32 %v685, %v624
  %688 = vrot.lane.b32.xlu0 %v685, 32
  %v689 = vpop.permute.xlu0 %688
  %v691 = vmul.f32 %v685, %v689
  %693 = vrot.lane.b32.xlu0 %v691, 32
  %v694 = vpop.permute.xlu0 %693
  %v696 = vadd.f32 %v686, %v694
  %v697 = vtanh.pop %v696
  %699 = vrot.lane.b32.xlu0 %v697, 32
  %v700 = vpop.permute.xlu0 %699
  %v702 = vmul.f32 %v685, %v700
  %s703 = scalar_lea.vmem [#allocation2], 56
  %v704 = vld [vmem:[%s703] sm:$0xff]
  %v705 = vpack.c.bf16 %v702, %v702
  %707 = vrot.lane.b32.xlu0 %v705, 64
  %v708 = vpop.permute.xlu0 %707
  %v710 = vsel %vm204, %v708, 0
  %712 = vmatprep.subr.bf16.mxu0 0
  %713 = vmatpush1.bf16.msra.mxu0 0
  %714 = vmatprep.subr.bf16.mxu0 0
  %715 = vmatpush1.bf16.msra.mxu0 0
  %716 = vmatprep.subr.bf16.mxu0 0
  %717 = vmatpush1.bf16.msra.mxu0 0
  %718 = vmatprep.subr.bf16.mxu0 0
  %719 = vmatpush1.bf16.msra.mxu0 0
  %720 = vmatprep.subr.bf16.mxu0 0
  %721 = vmatpush1.bf16.msra.mxu0 0
  %722 = vmatprep.subr.bf16.mxu0 0
  %723 = vmatpush1.bf16.msra.mxu0 0
  %724 = vmatprep.subr.bf16.mxu0 0
  %725 = vmatpush1.bf16.msra.mxu0 %v201
  %726 = vmatprep.subr.bf16.mxu0 0
  %727 = vmatpush1.bf16.msra.mxu0 %v200
  %728 = vmatprep.subr.bf16.mxu0 0
  %729 = vmatpush2.bf16.msra.mxu0 0
  %730 = vmatprep.subr.bf16.mxu0 0
  %731 = vmatpush2.bf16.msra.mxu0 0
  %732 = vmatprep.subr.bf16.mxu0 0
  %733 = vmatpush2.bf16.msra.mxu0 0
  %734 = vmatprep.subr.bf16.mxu0 0
  %735 = vmatpush2.bf16.msra.mxu0 0
  %736 = vmatprep.subr.bf16.mxu0 0
  %737 = vmatpush2.bf16.msra.mxu0 0
  %738 = vmatprep.subr.bf16.mxu0 0
  %739 = vmatpush2.bf16.msra.mxu0 0
  %740 = vmatprep.subr.bf16.mxu0 0
  %741 = vmatpush2.bf16.msra.mxu0 0
  %742 = vmatprep.subr.bf16.mxu0 0
  %743 = vmatpush2.bf16.msra.mxu0 0
  %744 = vmatprep.mubr.bf16.mxu0 0
  %745 = vmatmul.mubr.bf16.gmra.mxu0 %v710
  %v746 = vpop.f32.mrf.mxu0
  %v747 = vadd.f32 0.0, %v746
  %v748 = vpop.f32.mrf.mxu0
  %v749 = vpop.f32.mrf.mxu0
  %v750 = vpop.f32.mrf.mxu0
  %751 = vdwg.mxu0
  %v752 = vadd.f32 %v704, %v747
  %v753 = vmul.f32 %v752, %v26
  %v754 = vtanh.pop %v753
  %v755 = vmul.f32 %v754, 0.5
  %v756 = vadd.f32 %v755, 0.5
  %v757 = vsel %vm25, %v754, %v756
  %v758 = vmul.f32 %v757, %v696
  %760 = vrot.lane.b32.xlu0 %v757, 32
  %v761 = vpop.permute.xlu0 %760
  %v763 = vmul.f32 %v757, %v761
  %765 = vrot.lane.b32.xlu0 %v763, 32
  %v766 = vpop.permute.xlu0 %765
  %v768 = vadd.f32 %v758, %v766
  %v769 = vtanh.pop %v768
  %771 = vrot.lane.b32.xlu0 %v769, 32
  %v772 = vpop.permute.xlu0 %771
  %v774 = vmul.f32 %v757, %v772
  %v775 = vlaneseq
  %v776 = vshrl.u32 %v775, 7
  %v777 = vsub.s32 0, %v776
  %v778 = vrot.slane %v64, %v777
  %780 = vrot.lane.b32.xlu0 %v774, 64
  %v781 = vpop.permute.xlu0 %780
  %v782 = vsel %vm204, %v781, 0
  %784 = vmatprep.subr.mxu0 0.0
  %785 = vmatpush1.msra.mxu0 0.0
  %786 = vmatprep.subr.mxu0 0.0
  %787 = vmatpush1.msra.mxu0 0.0
  %788 = vmatprep.subr.mxu0 0.0
  %789 = vmatpush1.msra.mxu0 0.0
  %790 = vmatprep.subr.mxu0 0.0
  %791 = vmatpush1.msra.mxu0 0.0
  %792 = vmatprep.subr.mxu0 0.0
  %793 = vmatpush1.msra.mxu0 0.0
  %794 = vmatprep.subr.mxu0 0.0
  %795 = vmatpush1.msra.mxu0 0.0
  %796 = vmatprep.subr.mxu0 0.0
  %797 = vmatpush1.msra.mxu0 0.0
  %798 = vmatprep.subr.mxu0 0.0
  %799 = vmatpush1.msra.mxu0 0.0
  %800 = vmatprep.subr.mxu0 0.0
  %801 = vmatpush1.msra.mxu0 0.0
  %802 = vmatprep.subr.mxu0 0.0
  %803 = vmatpush1.msra.mxu0 0.0
  %804 = vmatprep.subr.mxu0 0.0
  %805 = vmatpush1.msra.mxu0 0.0
  %806 = vmatprep.subr.mxu0 0.0
  %807 = vmatpush1.msra.mxu0 0.0
  %808 = vmatprep.subr.mxu0 0.0
  %809 = vmatpush1.msra.mxu0 %v48
  %810 = vmatprep.subr.mxu0 0.0
  %811 = vmatpush1.msra.mxu0 %v47
  %812 = vmatprep.subr.mxu0 0.0
  %813 = vmatpush1.msra.mxu0 %v46
  %814 = vmatprep.subr.mxu0 0.0
  %815 = vmatpush1.msra.mxu0 %v45
  %816 = vmatprep.subr.mxu0 0.0
  %817 = vmatpush2.msra.mxu0 0.0
  %818 = vmatprep.subr.mxu0 0.0
  %819 = vmatpush2.msra.mxu0 0.0
  %820 = vmatprep.subr.mxu0 0.0
  %821 = vmatpush2.msra.mxu0 0.0
  %822 = vmatprep.subr.mxu0 0.0
  %823 = vmatpush2.msra.mxu0 0.0
  %824 = vmatprep.subr.mxu0 0.0
  %825 = vmatpush2.msra.mxu0 0.0
  %826 = vmatprep.subr.mxu0 0.0
  %827 = vmatpush2.msra.mxu0 0.0
  %828 = vmatprep.subr.mxu0 0.0
  %829 = vmatpush2.msra.mxu0 0.0
  %830 = vmatprep.subr.mxu0 0.0
  %831 = vmatpush2.msra.mxu0 0.0
  %832 = vmatprep.subr.mxu0 0.0
  %833 = vmatpush2.msra.mxu0 0.0
  %834 = vmatprep.subr.mxu0 0.0
  %835 = vmatpush2.msra.mxu0 0.0
  %836 = vmatprep.subr.mxu0 0.0
  %837 = vmatpush2.msra.mxu0 0.0
  %838 = vmatprep.subr.mxu0 0.0
  %839 = vmatpush2.msra.mxu0 0.0
  %840 = vmatprep.subr.mxu0 0.0
  %841 = vmatpush2.msra.mxu0 0.0
  %842 = vmatprep.subr.mxu0 0.0
  %843 = vmatpush2.msra.mxu0 0.0
  %844 = vmatprep.subr.mxu0 0.0
  %845 = vmatpush2.msra.mxu0 0.0
  %846 = vmatprep.subr.mxu0 0.0
  %847 = vmatpush2.msra.mxu0 0.0
  %848 = vmatprep.mubr.f32.mxu0 0.0
  %849 = vmatmul.mubr.f32.gmra.mxu0 %v782
  %v850 = vpop.f32.mrf.mxu0
  %v851 = vadd.f32 %v778, %v850
  %v852 = vpop.f32.mrf.mxu0
  %853 = vdwg.mxu0
  %v854 = vmul.f32 %v851, 0.5
  %v855 = vmul.f32 %v854, 1.442695
  %v856 = vpow.pop %v855
  %858 = vrot.lane.b32.xlu0 %v856, 112
  %v859 = vpop.permute.xlu0 %858
  %v861 = vmul.f32 %v61, %v859
  %v862 = vadd.f32 %v851, %v861
  %vm863 = vcmask 130048
  %v865 = vsel %vm863, %v862, 0
  %867 = vmatprep.subr.mxu0 0.0
  %868 = vmatpush1.msra.mxu0 0.0
  %869 = vmatprep.subr.mxu0 0.0
  %870 = vmatpush1.msra.mxu0 0.0
  %871 = vmatprep.subr.mxu0 0.0
  %872 = vmatpush1.msra.mxu0 0.0
  %873 = vmatprep.subr.mxu0 0.0
  %874 = vmatpush1.msra.mxu0 0.0
  %875 = vmatprep.subr.mxu0 0.0
  %876 = vmatpush1.msra.mxu0 0.0
  %877 = vmatprep.subr.mxu0 0.0
  %878 = vmatpush1.msra.mxu0 0.0
  %879 = vmatprep.subr.mxu0 0.0
  %880 = vmatpush1.msra.mxu0 0.0
  %881 = vmatprep.subr.mxu0 0.0
  %882 = vmatpush1.msra.mxu0 0.0
  %883 = vmatprep.subr.mxu0 0.0
  %884 = vmatpush1.msra.mxu0 0.0
  %885 = vmatprep.subr.mxu0 0.0
  %886 = vmatpush1.msra.mxu0 0.0
  %887 = vmatprep.subr.mxu0 0.0
  %888 = vmatpush1.msra.mxu0 0.0
  %889 = vmatprep.subr.mxu0 0.0
  %890 = vmatpush1.msra.mxu0 0.0
  %891 = vmatprep.subr.mxu0 0.0
  %892 = vmatpush1.msra.mxu0 0.0
  %893 = vmatprep.subr.mxu0 0.0
  %894 = vmatpush1.msra.mxu0 0.0
  %895 = vmatprep.subr.mxu0 0.0
  %896 = vmatpush1.msra.mxu0 %v44
  %897 = vmatprep.subr.mxu0 0.0
  %898 = vmatpush1.msra.mxu0 %v43
  %899 = vmatprep.subr.mxu0 0.0
  %900 = vmatpush2.msra.mxu0 0.0
  %901 = vmatprep.subr.mxu0 0.0
  %902 = vmatpush2.msra.mxu0 0.0
  %903 = vmatprep.subr.mxu0 0.0
  %904 = vmatpush2.msra.mxu0 0.0
  %905 = vmatprep.subr.mxu0 0.0
  %906 = vmatpush2.msra.mxu0 0.0
  %907 = vmatprep.subr.mxu0 0.0
  %908 = vmatpush2.msra.mxu0 0.0
  %909 = vmatprep.subr.mxu0 0.0
  %910 = vmatpush2.msra.mxu0 0.0
  %911 = vmatprep.subr.mxu0 0.0
  %912 = vmatpush2.msra.mxu0 0.0
  %913 = vmatprep.subr.mxu0 0.0
  %914 = vmatpush2.msra.mxu0 0.0
  %915 = vmatprep.subr.mxu0 0.0
  %916 = vmatpush2.msra.mxu0 0.0
  %917 = vmatprep.subr.mxu0 0.0
  %918 = vmatpush2.msra.mxu0 0.0
  %919 = vmatprep.subr.mxu0 0.0
  %920 = vmatpush2.msra.mxu0 0.0
  %921 = vmatprep.subr.mxu0 0.0
  %922 = vmatpush2.msra.mxu0 0.0
  %923 = vmatprep.subr.mxu0 0.0
  %924 = vmatpush2.msra.mxu0 0.0
  %925 = vmatprep.subr.mxu0 0.0
  %926 = vmatpush2.msra.mxu0 0.0
  %927 = vmatprep.subr.mxu0 0.0
  %928 = vmatpush2.msra.mxu0 0.0
  %929 = vmatprep.subr.mxu0 0.0
  %930 = vmatpush2.msra.mxu0 0.0
  %931 = vmatprep.mubr.f32.mxu0 0.0
  %932 = vmatmul.mubr.f32.gmra.mxu0 %v865
  %v933 = vpop.f32.mrf.mxu0
  %v934 = vadd.f32 0.0, %v933
  %v935 = vpop.f32.mrf.mxu0
  %936 = vdwg.mxu0
  %v937 = vld [vmem:[%s4] sm:$0xff]
  %v938 = vld [vmem:[%s4 + $0x8] sm:$0xff]
  %v939 = vld [vmem:[%s4 + $0x10] sm:$0xff]
  %v940 = vld [vmem:[%s4 + $0x18] sm:$0xff]
  %v941 = vld [vmem:[%s4 + $0x20] sm:$0xff]
  %v942 = vld [vmem:[%s4 + $0x28] sm:$0xff]
  %v943 = vld [vmem:[%s4 + $0x30] sm:$0xff]
  %v944 = vld [vmem:[%s4 + $0x38] sm:$0xff]
  %v945 = vlaneseq
  %v946 = vshrl.u32 %v945, 7
  %v947 = vsub.s32 0, %v946
  %v948 = vrot.slane %v63, %v947
  %vm949 = vcmask 64512
  %v951 = vsel %vm949, %v937, 0
  %v954 = vsel %vm949, %v938, 0
  %v957 = vsel %vm949, %v939, 0
  %v960 = vsel %vm949, %v940, 0
  %v963 = vsel %vm949, %v941, 0
  %v966 = vsel %vm949, %v942, 0
  %v969 = vsel %vm949, %v943, 0
  %v972 = vsel %vm949, %v944, 0
  %974 = vmatprep.subr.mxu0 0.0
  %975 = vmatpush1.msra.mxu0 0.0
  %976 = vmatprep.subr.mxu0 0.0
  %977 = vmatpush1.msra.mxu0 0.0
  %978 = vmatprep.subr.mxu0 0.0
  %979 = vmatpush1.msra.mxu0 0.0
  %980 = vmatprep.subr.mxu0 0.0
  %981 = vmatpush1.msra.mxu0 0.0
  %982 = vmatprep.subr.mxu0 0.0
  %983 = vmatpush1.msra.mxu0 0.0
  %984 = vmatprep.subr.mxu0 0.0
  %985 = vmatpush1.msra.mxu0 0.0
  %986 = vmatprep.subr.mxu0 0.0
  %987 = vmatpush1.msra.mxu0 0.0
  %988 = vmatprep.subr.mxu0 0.0
  %989 = vmatpush1.msra.mxu0 0.0
  %990 = vmatprep.subr.mxu0 0.0
  %991 = vmatpush1.msra.mxu0 0.0
  %992 = vmatprep.subr.mxu0 0.0
  %993 = vmatpush1.msra.mxu0 0.0
  %994 = vmatprep.subr.mxu0 0.0
  %995 = vmatpush1.msra.mxu0 0.0
  %996 = vmatprep.subr.mxu0 0.0
  %997 = vmatpush1.msra.mxu0 0.0
  %998 = vmatprep.subr.mxu0 0.0
  %999 = vmatpush1.msra.mxu0 0.0
  %1000 = vmatprep.subr.mxu0 0.0
  %1001 = vmatpush1.msra.mxu0 0.0
  %1002 = vmatprep.subr.mxu0 0.0
  %1003 = vmatpush1.msra.mxu0 0.0
  %1004 = vmatprep.subr.mxu0 0.0
  %1005 = vmatpush1.msra.mxu0 %v934
  %1006 = vmatprep.subr.mxu0 0.0
  %1007 = vmatpush2.msra.mxu0 0.0
  %1008 = vmatprep.subr.mxu0 0.0
  %1009 = vmatpush2.msra.mxu0 0.0
  %1010 = vmatprep.subr.mxu0 0.0
  %1011 = vmatpush2.msra.mxu0 0.0
  %1012 = vmatprep.subr.mxu0 0.0
  %1013 = vmatpush2.msra.mxu0 0.0
  %1014 = vmatprep.subr.mxu0 0.0
  %1015 = vmatpush2.msra.mxu0 0.0
  %1016 = vmatprep.subr.mxu0 0.0
  %1017 = vmatpush2.msra.mxu0 0.0
  %1018 = vmatprep.subr.mxu0 0.0
  %1019 = vmatpush2.msra.mxu0 0.0
  %1020 = vmatprep.subr.mxu0 0.0
  %1021 = vmatpush2.msra.mxu0 0.0
  %1022 = vmatprep.subr.mxu0 0.0
  %1023 = vmatpush2.msra.mxu0 0.0
  %1024 = vmatprep.subr.mxu0 0.0
  %1025 = vmatpush2.msra.mxu0 0.0
  %1026 = vmatprep.subr.mxu0 0.0
  %1027 = vmatpush2.msra.mxu0 0.0
  %1028 = vmatprep.subr.mxu0 0.0
  %1029 = vmatpush2.msra.mxu0 0.0
  %1030 = vmatprep.subr.mxu0 0.0
  %1031 = vmatpush2.msra.mxu0 0.0
  %1032 = vmatprep.subr.mxu0 0.0
  %1033 = vmatpush2.msra.mxu0 0.0
  %1034 = vmatprep.subr.mxu0 0.0
  %1035 = vmatpush2.msra.mxu0 0.0
  %1036 = vmatprep.subr.mxu0 0.0
  %1037 = vmatpush2.msra.mxu0 0.0
  %1038 = vmatprep.mubr.f32.mxu0 0.0
  %1039 = vmatmul.mubr.f32.gmra.mxu0 %v951
  %v1040 = vpop.f32.mrf.mxu0
  %v1041 = vadd.f32 %v948, %v1040
  %v1042 = vpop.f32.mrf.mxu0
  %1043 = vmatprep.mubr.f32.mxu0 0.0
  %1044 = vmatmul.mubr.f32.gmra.mxu0 %v954
  %v1045 = vpop.f32.mrf.mxu0
  %v1046 = vadd.f32 %v948, %v1045
  %v1047 = vpop.f32.mrf.mxu0
  %1048 = vmatprep.mubr.f32.mxu0 0.0
  %1049 = vmatmul.mubr.f32.gmra.mxu0 %v957
  %v1050 = vpop.f32.mrf.mxu0
  %v1051 = vadd.f32 %v948, %v1050
  %v1052 = vpop.f32.mrf.mxu0
  %1053 = vmatprep.mubr.f32.mxu0 0.0
  %1054 = vmatmul.mubr.f32.gmra.mxu0 %v960
  %v1055 = vpop.f32.mrf.mxu0
  %v1056 = vadd.f32 %v948, %v1055
  %v1057 = vpop.f32.mrf.mxu0
  %1058 = vmatprep.mubr.f32.mxu0 0.0
  %1059 = vmatmul.mubr.f32.gmra.mxu0 %v963
  %v1060 = vpop.f32.mrf.mxu0
  %v1061 = vadd.f32 %v948, %v1060
  %v1062 = vpop.f32.mrf.mxu0
  %1063 = vmatprep.mubr.f32.mxu0 0.0
  %1064 = vmatmul.mubr.f32.gmra.mxu0 %v966
  %v1065 = vpop.f32.mrf.mxu0
  %v1066 = vadd.f32 %v948, %v1065
  %v1067 = vpop.f32.mrf.mxu0
  %1068 = vmatprep.mubr.f32.mxu0 0.0
  %1069 = vmatmul.mubr.f32.gmra.mxu0 %v969
  %v1070 = vpop.f32.mrf.mxu0
  %v1071 = vadd.f32 %v948, %v1070
  %v1072 = vpop.f32.mrf.mxu0
  %1073 = vmatprep.mubr.f32.mxu0 0.0
  %1074 = vmatmul.mubr.f32.gmra.mxu0 %v972
  %v1075 = vpop.f32.mrf.mxu0
  %v1076 = vadd.f32 %v948, %v1075
  %v1077 = vpop.f32.mrf.mxu0
  %1078 = vdwg.mxu0
  %1079 = vst [vmem:[#allocation2] sm:$0xff] %v1041
  %1080 = vst [vmem:[#allocation2 + $0x8] sm:$0xff] %v1046
  %1081 = vst [vmem:[#allocation2 + $0x10] sm:$0xff] %v1051
  %1082 = vst [vmem:[#allocation2 + $0x18] sm:$0xff] %v1056
  %1083 = vst [vmem:[#allocation2 + $0x20] sm:$0xff] %v1061
  %1084 = vst [vmem:[#allocation2 + $0x28] sm:$0xff] %v1066
  %1085 = vst [vmem:[#allocation2 + $0x30] sm:$0xff] %v1071
  %1086 = vst [vmem:[#allocation2 + $0x38] sm:$0xff] %v1076
  %v1087 = vld [vmem:[#allocation2] sm:$0xff]
  %v1088 = vpack.c.bf16 %v774, %v774
  %1090 = vrot.lane.b32.xlu0 %v1088, 64
  %v1091 = vpop.permute.xlu0 %1090
  %v1096 = vunpack.c.l.b16 %v57
  %v1097 = vunpack.c.l.b16 %v58
  %v1098 = vunpack.c.l.b16 %v59
  %v1099 = vunpack.c.l.b16 %v60
  %v1100 = vpack.c.b16 %v1097, %v1096
  %v1101 = vpack.c.b16 %v1099, %v1098
  %v1105 = vsel %vm204, %v1091, 0
  %1107 = vmatprep.subr.bf16.mxu0 0
  %1108 = vmatpush1.bf16.msra.mxu0 0
  %1109 = vmatprep.subr.bf16.mxu0 0
  %1110 = vmatpush1.bf16.msra.mxu0 0
  %1111 = vmatprep.subr.bf16.mxu0 0
  %1112 = vmatpush1.bf16.msra.mxu0 0
  %1113 = vmatprep.subr.bf16.mxu0 0
  %1114 = vmatpush1.bf16.msra.mxu0 0
  %1115 = vmatprep.subr.bf16.mxu0 0
  %1116 = vmatpush1.bf16.msra.mxu0 0
  %1117 = vmatprep.subr.bf16.mxu0 0
  %1118 = vmatpush1.bf16.msra.mxu0 0
  %1119 = vmatprep.subr.bf16.mxu0 0
  %1120 = vmatpush1.bf16.msra.mxu0 %v1101
  %1121 = vmatprep.subr.bf16.mxu0 0
  %1122 = vmatpush1.bf16.msra.mxu0 %v1100
  %1123 = vmatprep.subr.bf16.mxu0 0
  %1124 = vmatpush2.bf16.msra.mxu0 0
  %1125 = vmatprep.subr.bf16.mxu0 0
  %1126 = vmatpush2.bf16.msra.mxu0 0
  %1127 = vmatprep.subr.bf16.mxu0 0
  %1128 = vmatpush2.bf16.msra.mxu0 0
  %1129 = vmatprep.subr.bf16.mxu0 0
  %1130 = vmatpush2.bf16.msra.mxu0 0
  %1131 = vmatprep.subr.bf16.mxu0 0
  %1132 = vmatpush2.bf16.msra.mxu0 0
  %1133 = vmatprep.subr.bf16.mxu0 0
  %1134 = vmatpush2.bf16.msra.mxu0 0
  %1135 = vmatprep.subr.bf16.mxu0 0
  %1136 = vmatpush2.bf16.msra.mxu0 0
  %1137 = vmatprep.subr.bf16.mxu0 0
  %1138 = vmatpush2.bf16.msra.mxu0 0
  %1139 = vmatprep.mubr.bf16.mxu0 0
  %1140 = vmatmul.mubr.bf16.gmra.mxu0 %v1105
  %v1141 = vpop.f32.mrf.mxu0
  %v1142 = vadd.f32 0.0, %v1141
  %v1143 = vpop.f32.mrf.mxu0
  %v1144 = vpop.f32.mrf.mxu0
  %v1145 = vpop.f32.mrf.mxu0
  %1146 = vdwg.mxu0
  %v1147 = vadd.f32 %v1087, %v1142
  %v1148 = vmul.f32 %v1147, %v26
  %v1149 = vtanh.pop %v1148
  %v1150 = vmul.f32 %v1149, 0.5
  %v1151 = vadd.f32 %v1150, 0.5
  %v1152 = vsel %vm25, %v1149, %v1151
  %v1153 = vmul.f32 %v1152, %v768
  %1155 = vrot.lane.b32.xlu0 %v1152, 32
  %v1156 = vpop.permute.xlu0 %1155
  %v1158 = vmul.f32 %v1152, %v1156
  %1160 = vrot.lane.b32.xlu0 %v1158, 32
  %v1161 = vpop.permute.xlu0 %1160
  %v1163 = vadd.f32 %v1153, %v1161
  %v1164 = vtanh.pop %v1163
  %1166 = vrot.lane.b32.xlu0 %v1164, 32
  %v1167 = vpop.permute.xlu0 %1166
  %v1169 = vmul.f32 %v1152, %v1167
  %1171 = vrot.lane.b32.xlu0 %v1169, 64
  %v1172 = vpop.permute.xlu0 %1171
  %1174 = vst.msk [vmem:[#allocation3] sm:$0xff] %vm204, %v1172
  %v1175 = vld [vmem:[%s271] sm:$0xff]
  %v1176 = vpack.c.bf16 %v1169, %v1169
  %1178 = vrot.lane.b32.xlu0 %v1176, 64
  %v1179 = vpop.permute.xlu0 %1178
  %v1181 = vsel %vm204, %v1179, 0
  %1183 = vmatprep.subr.bf16.mxu0 0
  %1184 = vmatpush1.bf16.msra.mxu0 0
  %1185 = vmatprep.subr.bf16.mxu0 0
  %1186 = vmatpush1.bf16.msra.mxu0 0
  %1187 = vmatprep.subr.bf16.mxu0 0
  %1188 = vmatpush1.bf16.msra.mxu0 0
  %1189 = vmatprep.subr.bf16.mxu0 0
  %1190 = vmatpush1.bf16.msra.mxu0 0
  %1191 = vmatprep.subr.bf16.mxu0 0
  %1192 = vmatpush1.bf16.msra.mxu0 0
  %1193 = vmatprep.subr.bf16.mxu0 0
  %1194 = vmatpush1.bf16.msra.mxu0 0
  %1195 = vmatprep.subr.bf16.mxu0 0
  %1196 = vmatpush1.bf16.msra.mxu0 %v1101
  %1197 = vmatprep.subr.bf16.mxu0 0
  %1198 = vmatpush1.bf16.msra.mxu0 %v1100
  %1199 = vmatprep.subr.bf16.mxu0 0
  %1200 = vmatpush2.bf16.msra.mxu0 0
  %1201 = vmatprep.subr.bf16.mxu0 0
  %1202 = vmatpush2.bf16.msra.mxu0 0
  %1203 = vmatprep.subr.bf16.mxu0 0
  %1204 = vmatpush2.bf16.msra.mxu0 0
  %1205 = vmatprep.subr.bf16.mxu0 0
  %1206 = vmatpush2.bf16.msra.mxu0 0
  %1207 = vmatprep.subr.bf16.mxu0 0
  %1208 = vmatpush2.bf16.msra.mxu0 0
  %1209 = vmatprep.subr.bf16.mxu0 0
  %1210 = vmatpush2.bf16.msra.mxu0 0
  %1211 = vmatprep.subr.bf16.mxu0 0
  %1212 = vmatpush2.bf16.msra.mxu0 0
  %1213 = vmatprep.subr.bf16.mxu0 0
  %1214 = vmatpush2.bf16.msra.mxu0 0
  %1215 = vmatprep.mubr.bf16.mxu0 0
  %1216 = vmatmul.mubr.bf16.gmra.mxu0 %v1181
  %v1217 = vpop.f32.mrf.mxu0
  %v1218 = vadd.f32 0.0, %v1217
  %v1219 = vpop.f32.mrf.mxu0
  %v1220 = vpop.f32.mrf.mxu0
  %v1221 = vpop.f32.mrf.mxu0
  %1222 = vdwg.mxu0
  %v1223 = vadd.f32 %v1175, %v1218
  %v1224 = vmul.f32 %v1223, %v26
  %v1225 = vtanh.pop %v1224
  %v1226 = vmul.f32 %v1225, 0.5
  %v1227 = vadd.f32 %v1226, 0.5
  %v1228 = vsel %vm25, %v1225, %v1227
  %v1229 = vmul.f32 %v1228, %v1163
  %1231 = vrot.lane.b32.xlu0 %v1228, 32
  %v1232 = vpop.permute.xlu0 %1231
  %v1234 = vmul.f32 %v1228, %v1232
  %1236 = vrot.lane.b32.xlu0 %v1234, 32
  %v1237 = vpop.permute.xlu0 %1236
  %v1239 = vadd.f32 %v1229, %v1237
  %v1240 = vtanh.pop %v1239
  %1242 = vrot.lane.b32.xlu0 %v1240, 32
  %v1243 = vpop.permute.xlu0 %1242
  %v1245 = vmul.f32 %v1228, %v1243
  %1247 = vrot.lane.b32.xlu0 %v1245, 64
  %v1248 = vpop.permute.xlu0 %1247
  %s1250 = scalar_lea.vmem [#allocation3], 8
  %1251 = vst.msk [vmem:[%s1250] sm:$0xff] %vm204, %v1248
  %v1252 = vld [vmem:[%s343] sm:$0xff]
  %v1253 = vpack.c.bf16 %v1245, %v1245
  %1255 = vrot.lane.b32.xlu0 %v1253, 64
  %v1256 = vpop.permute.xlu0 %1255
  %v1258 = vsel %vm204, %v1256, 0
  %1260 = vmatprep.subr.bf16.mxu0 0
  %1261 = vmatpush1.bf16.msra.mxu0 0
  %1262 = vmatprep.subr.bf16.mxu0 0
  %1263 = vmatpush1.bf16.msra.mxu0 0
  %1264 = vmatprep.subr.bf16.mxu0 0
  %1265 = vmatpush1.bf16.msra.mxu0 0
  %1266 = vmatprep.subr.bf16.mxu0 0
  %1267 = vmatpush1.bf16.msra.mxu0 0
  %1268 = vmatprep.subr.bf16.mxu0 0
  %1269 = vmatpush1.bf16.msra.mxu0 0
  %1270 = vmatprep.subr.bf16.mxu0 0
  %1271 = vmatpush1.bf16.msra.mxu0 0
  %1272 = vmatprep.subr.bf16.mxu0 0
  %1273 = vmatpush1.bf16.msra.mxu0 %v1101
  %1274 = vmatprep.subr.bf16.mxu0 0
  %1275 = vmatpush1.bf16.msra.mxu0 %v1100
  %1276 = vmatprep.subr.bf16.mxu0 0
  %1277 = vmatpush2.bf16.msra.mxu0 0
  %1278 = vmatprep.subr.bf16.mxu0 0
  %1279 = vmatpush2.bf16.msra.mxu0 0
  %1280 = vmatprep.subr.bf16.mxu0 0
  %1281 = vmatpush2.bf16.msra.mxu0 0
  %1282 = vmatprep.subr.bf16.mxu0 0
  %1283 = vmatpush2.bf16.msra.mxu0 0
  %1284 = vmatprep.subr.bf16.mxu0 0
  %1285 = vmatpush2.bf16.msra.mxu0 0
  %1286 = vmatprep.subr.bf16.mxu0 0
  %1287 = vmatpush2.bf16.msra.mxu0 0
  %1288 = vmatprep.subr.bf16.mxu0 0
  %1289 = vmatpush2.bf16.msra.mxu0 0
  %1290 = vmatprep.subr.bf16.mxu0 0
  %1291 = vmatpush2.bf16.msra.mxu0 0
  %1292 = vmatprep.mubr.bf16.mxu0 0
  %1293 = vmatmul.mubr.bf16.gmra.mxu0 %v1258
  %v1294 = vpop.f32.mrf.mxu0
  %v1295 = vadd.f32 0.0, %v1294
  %v1296 = vpop.f32.mrf.mxu0
  %v1297 = vpop.f32.mrf.mxu0
  %v1298 = vpop.f32.mrf.mxu0
  %1299 = vdwg.mxu0
  %v1300 = vadd.f32 %v1252, %v1295
  %v1301 = vmul.f32 %v1300, %v26
  %v1302 = vtanh.pop %v1301
  %v1303 = vmul.f32 %v1302, 0.5
  %v1304 = vadd.f32 %v1303, 0.5
  %v1305 = vsel %vm25, %v1302, %v1304
  %v1306 = vmul.f32 %v1305, %v1239
  %1308 = vrot.lane.b32.xlu0 %v1305, 32
  %v1309 = vpop.permute.xlu0 %1308
  %v1311 = vmul.f32 %v1305, %v1309
  %1313 = vrot.lane.b32.xlu0 %v1311, 32
  %v1314 = vpop.permute.xlu0 %1313
  %v1316 = vadd.f32 %v1306, %v1314
  %v1317 = vtanh.pop %v1316
  %1319 = vrot.lane.b32.xlu0 %v1317, 32
  %v1320 = vpop.permute.xlu0 %1319
  %v1322 = vmul.f32 %v1305, %v1320
  %1324 = vrot.lane.b32.xlu0 %v1322, 64
  %v1325 = vpop.permute.xlu0 %1324
  %s1327 = scalar_lea.vmem [#allocation3], 16
  %1328 = vst.msk [vmem:[%s1327] sm:$0xff] %vm204, %v1325
  %v1329 = vld [vmem:[%s415] sm:$0xff]
  %v1330 = vpack.c.bf16 %v1322, %v1322
  %1332 = vrot.lane.b32.xlu0 %v1330, 64
  %v1333 = vpop.permute.xlu0 %1332
  %v1335 = vsel %vm204, %v1333, 0
  %1337 = vmatprep.subr.bf16.mxu0 0
  %1338 = vmatpush1.bf16.msra.mxu0 0
  %1339 = vmatprep.subr.bf16.mxu0 0
  %1340 = vmatpush1.bf16.msra.mxu0 0
  %1341 = vmatprep.subr.bf16.mxu0 0
  %1342 = vmatpush1.bf16.msra.mxu0 0
  %1343 = vmatprep.subr.bf16.mxu0 0
  %1344 = vmatpush1.bf16.msra.mxu0 0
  %1345 = vmatprep.subr.bf16.mxu0 0
  %1346 = vmatpush1.bf16.msra.mxu0 0
  %1347 = vmatprep.subr.bf16.mxu0 0
  %1348 = vmatpush1.bf16.msra.mxu0 0
  %1349 = vmatprep.subr.bf16.mxu0 0
  %1350 = vmatpush1.bf16.msra.mxu0 %v1101
  %1351 = vmatprep.subr.bf16.mxu0 0
  %1352 = vmatpush1.bf16.msra.mxu0 %v1100
  %1353 = vmatprep.subr.bf16.mxu0 0
  %1354 = vmatpush2.bf16.msra.mxu0 0
  %1355 = vmatprep.subr.bf16.mxu0 0
  %1356 = vmatpush2.bf16.msra.mxu0 0
  %1357 = vmatprep.subr.bf16.mxu0 0
  %1358 = vmatpush2.bf16.msra.mxu0 0
  %1359 = vmatprep.subr.bf16.mxu0 0
  %1360 = vmatpush2.bf16.msra.mxu0 0
  %1361 = vmatprep.subr.bf16.mxu0 0
  %1362 = vmatpush2.bf16.msra.mxu0 0
  %1363 = vmatprep.subr.bf16.mxu0 0
  %1364 = vmatpush2.bf16.msra.mxu0 0
  %1365 = vmatprep.subr.bf16.mxu0 0
  %1366 = vmatpush2.bf16.msra.mxu0 0
  %1367 = vmatprep.subr.bf16.mxu0 0
  %1368 = vmatpush2.bf16.msra.mxu0 0
  %1369 = vmatprep.mubr.bf16.mxu0 0
  %1370 = vmatmul.mubr.bf16.gmra.mxu0 %v1335
  %v1371 = vpop.f32.mrf.mxu0
  %v1372 = vadd.f32 0.0, %v1371
  %v1373 = vpop.f32.mrf.mxu0
  %v1374 = vpop.f32.mrf.mxu0
  %v1375 = vpop.f32.mrf.mxu0
  %1376 = vdwg.mxu0
  %v1377 = vadd.f32 %v1329, %v1372
  %v1378 = vmul.f32 %v1377, %v26
  %v1379 = vtanh.pop %v1378
  %v1380 = vmul.f32 %v1379, 0.5
  %v1381 = vadd.f32 %v1380, 0.5
  %v1382 = vsel %vm25, %v1379, %v1381
  %v1383 = vmul.f32 %v1382, %v1316
  %1385 = vrot.lane.b32.xlu0 %v1382, 32
  %v1386 = vpop.permute.xlu0 %1385
  %v1388 = vmul.f32 %v1382, %v1386
  %1390 = vrot.lane.b32.xlu0 %v1388, 32
  %v1391 = vpop.permute.xlu0 %1390
  %v1393 = vadd.f32 %v1383, %v1391
  %v1394 = vtanh.pop %v1393
  %1396 = vrot.lane.b32.xlu0 %v1394, 32
  %v1397 = vpop.permute.xlu0 %1396
  %v1399 = vmul.f32 %v1382, %v1397
  %1401 = vrot.lane.b32.xlu0 %v1399, 64
  %v1402 = vpop.permute.xlu0 %1401
  %s1404 = scalar_lea.vmem [#allocation3], 24
  %1405 = vst.msk [vmem:[%s1404] sm:$0xff] %vm204, %v1402
  %v1406 = vld [vmem:[%s487] sm:$0xff]
  %v1407 = vpack.c.bf16 %v1399, %v1399
  %1409 = vrot.lane.b32.xlu0 %v1407, 64
  %v1410 = vpop.permute.xlu0 %1409
  %v1412 = vsel %vm204, %v1410, 0
  %1414 = vmatprep.subr.bf16.mxu0 0
  %1415 = vmatpush1.bf16.msra.mxu0 0
  %1416 = vmatprep.subr.bf16.mxu0 0
  %1417 = vmatpush1.bf16.msra.mxu0 0
  %1418 = vmatprep.subr.bf16.mxu0 0
  %1419 = vmatpush1.bf16.msra.mxu0 0
  %1420 = vmatprep.subr.bf16.mxu0 0
  %1421 = vmatpush1.bf16.msra.mxu0 0
  %1422 = vmatprep.subr.bf16.mxu0 0
  %1423 = vmatpush1.bf16.msra.mxu0 0
  %1424 = vmatprep.subr.bf16.mxu0 0
  %1425 = vmatpush1.bf16.msra.mxu0 0
  %1426 = vmatprep.subr.bf16.mxu0 0
  %1427 = vmatpush1.bf16.msra.mxu0 %v1101
  %1428 = vmatprep.subr.bf16.mxu0 0
  %1429 = vmatpush1.bf16.msra.mxu0 %v1100
  %1430 = vmatprep.subr.bf16.mxu0 0
  %1431 = vmatpush2.bf16.msra.mxu0 0
  %1432 = vmatprep.subr.bf16.mxu0 0
  %1433 = vmatpush2.bf16.msra.mxu0 0
  %1434 = vmatprep.subr.bf16.mxu0 0
  %1435 = vmatpush2.bf16.msra.mxu0 0
  %1436 = vmatprep.subr.bf16.mxu0 0
  %1437 = vmatpush2.bf16.msra.mxu0 0
  %1438 = vmatprep.subr.bf16.mxu0 0
  %1439 = vmatpush2.bf16.msra.mxu0 0
  %1440 = vmatprep.subr.bf16.mxu0 0
  %1441 = vmatpush2.bf16.msra.mxu0 0
  %1442 = vmatprep.subr.bf16.mxu0 0
  %1443 = vmatpush2.bf16.msra.mxu0 0
  %1444 = vmatprep.subr.bf16.mxu0 0
  %1445 = vmatpush2.bf16.msra.mxu0 0
  %1446 = vmatprep.mubr.bf16.mxu0 0
  %1447 = vmatmul.mubr.bf16.gmra.mxu0 %v1412
  %v1448 = vpop.f32.mrf.mxu0
  %v1449 = vadd.f32 0.0, %v1448
  %v1450 = vpop.f32.mrf.mxu0
  %v1451 = vpop.f32.mrf.mxu0
  %v1452 = vpop.f32.mrf.mxu0
  %1453 = vdwg.mxu0
  %v1454 = vadd.f32 %v1406, %v1449
  %v1455 = vmul.f32 %v1454, %v26
  %v1456 = vtanh.pop %v1455
  %v1457 = vmul.f32 %v1456, 0.5
  %v1458 = vadd.f32 %v1457, 0.5
  %v1459 = vsel %vm25, %v1456, %v1458
  %v1460 = vmul.f32 %v1459, %v1393
  %1462 = vrot.lane.b32.xlu0 %v1459, 32
  %v1463 = vpop.permute.xlu0 %1462
  %v1465 = vmul.f32 %v1459, %v1463
  %1467 = vrot.lane.b32.xlu0 %v1465, 32
  %v1468 = vpop.permute.xlu0 %1467
  %v1470 = vadd.f32 %v1460, %v1468
  %v1471 = vtanh.pop %v1470
  %1473 = vrot.lane.b32.xlu0 %v1471, 32
  %v1474 = vpop.permute.xlu0 %1473
  %v1476 = vmul.f32 %v1459, %v1474
  %1478 = vrot.lane.b32.xlu0 %v1476, 64
  %v1479 = vpop.permute.xlu0 %1478
  %s1481 = scalar_lea.vmem [#allocation3], 32
  %1482 = vst.msk [vmem:[%s1481] sm:$0xff] %vm204, %v1479
  %v1483 = vld [vmem:[%s559] sm:$0xff]
  %v1484 = vpack.c.bf16 %v1476, %v1476
  %1486 = vrot.lane.b32.xlu0 %v1484, 64
  %v1487 = vpop.permute.xlu0 %1486
  %v1489 = vsel %vm204, %v1487, 0
  %1491 = vmatprep.subr.bf16.mxu0 0
  %1492 = vmatpush1.bf16.msra.mxu0 0
  %1493 = vmatprep.subr.bf16.mxu0 0
  %1494 = vmatpush1.bf16.msra.mxu0 0
  %1495 = vmatprep.subr.bf16.mxu0 0
  %1496 = vmatpush1.bf16.msra.mxu0 0
  %1497 = vmatprep.subr.bf16.mxu0 0
  %1498 = vmatpush1.bf16.msra.mxu0 0
  %1499 = vmatprep.subr.bf16.mxu0 0
  %1500 = vmatpush1.bf16.msra.mxu0 0
  %1501 = vmatprep.subr.bf16.mxu0 0
  %1502 = vmatpush1.bf16.msra.mxu0 0
  %1503 = vmatprep.subr.bf16.mxu0 0
  %1504 = vmatpush1.bf16.msra.mxu0 %v1101
  %1505 = vmatprep.subr.bf16.mxu0 0
  %1506 = vmatpush1.bf16.msra.mxu0 %v1100
  %1507 = vmatprep.subr.bf16.mxu0 0
  %1508 = vmatpush2.bf16.msra.mxu0 0
  %1509 = vmatprep.subr.bf16.mxu0 0
  %1510 = vmatpush2.bf16.msra.mxu0 0
  %1511 = vmatprep.subr.bf16.mxu0 0
  %1512 = vmatpush2.bf16.msra.mxu0 0
  %1513 = vmatprep.subr.bf16.mxu0 0
  %1514 = vmatpush2.bf16.msra.mxu0 0
  %1515 = vmatprep.subr.bf16.mxu0 0
  %1516 = vmatpush2.bf16.msra.mxu0 0
  %1517 = vmatprep.subr.bf16.mxu0 0
  %1518 = vmatpush2.bf16.msra.mxu0 0
  %1519 = vmatprep.subr.bf16.mxu0 0
  %1520 = vmatpush2.bf16.msra.mxu0 0
  %1521 = vmatprep.subr.bf16.mxu0 0
  %1522 = vmatpush2.bf16.msra.mxu0 0
  %1523 = vmatprep.mubr.bf16.mxu0 0
  %1524 = vmatmul.mubr.bf16.gmra.mxu0 %v1489
  %v1525 = vpop.f32.mrf.mxu0
  %v1526 = vadd.f32 0.0, %v1525
  %v1527 = vpop.f32.mrf.mxu0
  %v1528 = vpop.f32.mrf.mxu0
  %v1529 = vpop.f32.mrf.mxu0
  %1530 = vdwg.mxu0
  %v1531 = vadd.f32 %v1483, %v1526
  %v1532 = vmul.f32 %v1531, %v26
  %v1533 = vtanh.pop %v1532
  %v1534 = vmul.f32 %v1533, 0.5
  %v1535 = vadd.f32 %v1534, 0.5
  %v1536 = vsel %vm25, %v1533, %v1535
  %v1537 = vmul.f32 %v1536, %v1470
  %1539 = vrot.lane.b32.xlu0 %v1536, 32
  %v1540 = vpop.permute.xlu0 %1539
  %v1542 = vmul.f32 %v1536, %v1540
  %1544 = vrot.lane.b32.xlu0 %v1542, 32
  %v1545 = vpop.permute.xlu0 %1544
  %v1547 = vadd.f32 %v1537, %v1545
  %v1548 = vtanh.pop %v1547
  %1550 = vrot.lane.b32.xlu0 %v1548, 32
  %v1551 = vpop.permute.xlu0 %1550
  %v1553 = vmul.f32 %v1536, %v1551
  %1555 = vrot.lane.b32.xlu0 %v1553, 64
  %v1556 = vpop.permute.xlu0 %1555
  %s1558 = scalar_lea.vmem [#allocation3], 40
  %1559 = vst.msk [vmem:[%s1558] sm:$0xff] %vm204, %v1556
  %v1560 = vld [vmem:[%s631] sm:$0xff]
  %v1561 = vpack.c.bf16 %v1553, %v1553
  %1563 = vrot.lane.b32.xlu0 %v1561, 64
  %v1564 = vpop.permute.xlu0 %1563
  %v1566 = vsel %vm204, %v1564, 0
  %1568 = vmatprep.subr.bf16.mxu0 0
  %1569 = vmatpush1.bf16.msra.mxu0 0
  %1570 = vmatprep.subr.bf16.mxu0 0
  %1571 = vmatpush1.bf16.msra.mxu0 0
  %1572 = vmatprep.subr.bf16.mxu0 0
  %1573 = vmatpush1.bf16.msra.mxu0 0
  %1574 = vmatprep.subr.bf16.mxu0 0
  %1575 = vmatpush1.bf16.msra.mxu0 0
  %1576 = vmatprep.subr.bf16.mxu0 0
  %1577 = vmatpush1.bf16.msra.mxu0 0
  %1578 = vmatprep.subr.bf16.mxu0 0
  %1579 = vmatpush1.bf16.msra.mxu0 0
  %1580 = vmatprep.subr.bf16.mxu0 0
  %1581 = vmatpush1.bf16.msra.mxu0 %v1101
  %1582 = vmatprep.subr.bf16.mxu0 0
  %1583 = vmatpush1.bf16.msra.mxu0 %v1100
  %1584 = vmatprep.subr.bf16.mxu0 0
  %1585 = vmatpush2.bf16.msra.mxu0 0
  %1586 = vmatprep.subr.bf16.mxu0 0
  %1587 = vmatpush2.bf16.msra.mxu0 0
  %1588 = vmatprep.subr.bf16.mxu0 0
  %1589 = vmatpush2.bf16.msra.mxu0 0
  %1590 = vmatprep.subr.bf16.mxu0 0
  %1591 = vmatpush2.bf16.msra.mxu0 0
  %1592 = vmatprep.subr.bf16.mxu0 0
  %1593 = vmatpush2.bf16.msra.mxu0 0
  %1594 = vmatprep.subr.bf16.mxu0 0
  %1595 = vmatpush2.bf16.msra.mxu0 0
  %1596 = vmatprep.subr.bf16.mxu0 0
  %1597 = vmatpush2.bf16.msra.mxu0 0
  %1598 = vmatprep.subr.bf16.mxu0 0
  %1599 = vmatpush2.bf16.msra.mxu0 0
  %1600 = vmatprep.mubr.bf16.mxu0 0
  %1601 = vmatmul.mubr.bf16.gmra.mxu0 %v1566
  %v1602 = vpop.f32.mrf.mxu0
  %v1603 = vadd.f32 0.0, %v1602
  %v1604 = vpop.f32.mrf.mxu0
  %v1605 = vpop.f32.mrf.mxu0
  %v1606 = vpop.f32.mrf.mxu0
  %1607 = vdwg.mxu0
  %v1608 = vadd.f32 %v1560, %v1603
  %v1609 = vmul.f32 %v1608, %v26
  %v1610 = vtanh.pop %v1609
  %v1611 = vmul.f32 %v1610, 0.5
  %v1612 = vadd.f32 %v1611, 0.5
  %v1613 = vsel %vm25, %v1610, %v1612
  %v1614 = vmul.f32 %v1613, %v1547
  %1616 = vrot.lane.b32.xlu0 %v1613, 32
  %v1617 = vpop.permute.xlu0 %1616
  %v1619 = vmul.f32 %v1613, %v1617
  %1621 = vrot.lane.b32.xlu0 %v1619, 32
  %v1622 = vpop.permute.xlu0 %1621
  %v1624 = vadd.f32 %v1614, %v1622
  %v1625 = vtanh.pop %v1624
  %1627 = vrot.lane.b32.xlu0 %v1625, 32
  %v1628 = vpop.permute.xlu0 %1627
  %v1630 = vmul.f32 %v1613, %v1628
  %1632 = vrot.lane.b32.xlu0 %v1630, 64
  %v1633 = vpop.permute.xlu0 %1632
  %s1635 = scalar_lea.vmem [#allocation3], 48
  %1636 = vst.msk [vmem:[%s1635] sm:$0xff] %vm204, %v1633
  %v1637 = vld [vmem:[%s703] sm:$0xff]
  %v1638 = vpack.c.bf16 %v1630, %v1630
  %1640 = vrot.lane.b32.xlu0 %v1638, 64
  %v1641 = vpop.permute.xlu0 %1640
  %v1643 = vsel %vm204, %v1641, 0
  %1645 = vmatprep.subr.bf16.mxu0 0
  %1646 = vmatpush1.bf16.msra.mxu0 0
  %1647 = vmatprep.subr.bf16.mxu0 0
  %1648 = vmatpush1.bf16.msra.mxu0 0
  %1649 = vmatprep.subr.bf16.mxu0 0
  %1650 = vmatpush1.bf16.msra.mxu0 0
  %1651 = vmatprep.subr.bf16.mxu0 0
  %1652 = vmatpush1.bf16.msra.mxu0 0
  %1653 = vmatprep.subr.bf16.mxu0 0
  %1654 = vmatpush1.bf16.msra.mxu0 0
  %1655 = vmatprep.subr.bf16.mxu0 0
  %1656 = vmatpush1.bf16.msra.mxu0 0
  %1657 = vmatprep.subr.bf16.mxu0 0
  %1658 = vmatpush1.bf16.msra.mxu0 %v1101
  %1659 = vmatprep.subr.bf16.mxu0 0
  %1660 = vmatpush1.bf16.msra.mxu0 %v1100
  %1661 = vmatprep.subr.bf16.mxu0 0
  %1662 = vmatpush2.bf16.msra.mxu0 0
  %1663 = vmatprep.subr.bf16.mxu0 0
  %1664 = vmatpush2.bf16.msra.mxu0 0
  %1665 = vmatprep.subr.bf16.mxu0 0
  %1666 = vmatpush2.bf16.msra.mxu0 0
  %1667 = vmatprep.subr.bf16.mxu0 0
  %1668 = vmatpush2.bf16.msra.mxu0 0
  %1669 = vmatprep.subr.bf16.mxu0 0
  %1670 = vmatpush2.bf16.msra.mxu0 0
  %1671 = vmatprep.subr.bf16.mxu0 0
  %1672 = vmatpush2.bf16.msra.mxu0 0
  %1673 = vmatprep.subr.bf16.mxu0 0
  %1674 = vmatpush2.bf16.msra.mxu0 0
  %1675 = vmatprep.subr.bf16.mxu0 0
  %1676 = vmatpush2.bf16.msra.mxu0 0
  %1677 = vmatprep.mubr.bf16.mxu0 0
  %1678 = vmatmul.mubr.bf16.gmra.mxu0 %v1643
  %v1679 = vpop.f32.mrf.mxu0
  %v1680 = vadd.f32 0.0, %v1679
  %v1681 = vpop.f32.mrf.mxu0
  %v1682 = vpop.f32.mrf.mxu0
  %v1683 = vpop.f32.mrf.mxu0
  %1684 = vdwg.mxu0
  %v1685 = vadd.f32 %v1637, %v1680
  %v1686 = vmul.f32 %v1685, %v26
  %v1687 = vtanh.pop %v1686
  %v1688 = vmul.f32 %v1687, 0.5
  %v1689 = vadd.f32 %v1688, 0.5
  %v1690 = vsel %vm25, %v1687, %v1689
  %v1691 = vmul.f32 %v1690, %v1624
  %1693 = vrot.lane.b32.xlu0 %v1690, 32
  %v1694 = vpop.permute.xlu0 %1693
  %v1696 = vmul.f32 %v1690, %v1694
  %1698 = vrot.lane.b32.xlu0 %v1696, 32
  %v1699 = vpop.permute.xlu0 %1698
  %v1701 = vadd.f32 %v1691, %v1699
  %v1702 = vtanh.pop %v1701
  %1704 = vrot.lane.b32.xlu0 %v1702, 32
  %v1705 = vpop.permute.xlu0 %1704
  %v1707 = vmul.f32 %v1690, %v1705
  %1709 = vrot.lane.b32.xlu0 %v1707, 64
  %v1710 = vpop.permute.xlu0 %1709
  %s1712 = scalar_lea.vmem [#allocation3], 56
  %1713 = vst.msk [vmem:[%s1712] sm:$0xff] %vm204, %v1710
  %v1714 = vld [vmem:[#allocation3] sm:$0xff]
  %v1715 = vld [vmem:[#allocation3 + $0x8] sm:$0xff]
  %v1716 = vld [vmem:[#allocation3 + $0x10] sm:$0xff]
  %v1717 = vld [vmem:[#allocation3 + $0x18] sm:$0xff]
  %v1718 = vld [vmem:[#allocation3 + $0x20] sm:$0xff]
  %v1719 = vld [vmem:[#allocation3 + $0x28] sm:$0xff]
  %v1720 = vld [vmem:[#allocation3 + $0x30] sm:$0xff]
  %v1721 = vld [vmem:[#allocation3 + $0x38] sm:$0xff]
  %v1722 = vlaneseq
  %v1723 = vshrl.u32 %v1722, 7
  %v1724 = vsub.s32 0, %v1723
  %v1725 = vrot.slane %v65, %v1724
  %v1727 = vsel %vm204, %v1714, 0
  %v1730 = vsel %vm204, %v1715, 0
  %v1733 = vsel %vm204, %v1716, 0
  %v1736 = vsel %vm204, %v1717, 0
  %v1739 = vsel %vm204, %v1718, 0
  %v1742 = vsel %vm204, %v1719, 0
  %v1745 = vsel %vm204, %v1720, 0
  %v1748 = vsel %vm204, %v1721, 0
  %1750 = vmatprep.subr.mxu0 0.0
  %1751 = vmatpush1.msra.mxu0 0.0
  %1752 = vmatprep.subr.mxu0 0.0
  %1753 = vmatpush1.msra.mxu0 0.0
  %1754 = vmatprep.subr.mxu0 0.0
  %1755 = vmatpush1.msra.mxu0 0.0
  %1756 = vmatprep.subr.mxu0 0.0
  %1757 = vmatpush1.msra.mxu0 0.0
  %1758 = vmatprep.subr.mxu0 0.0
  %1759 = vmatpush1.msra.mxu0 0.0
  %1760 = vmatprep.subr.mxu0 0.0
  %1761 = vmatpush1.msra.mxu0 0.0
  %1762 = vmatprep.subr.mxu0 0.0
  %1763 = vmatpush1.msra.mxu0 0.0
  %1764 = vmatprep.subr.mxu0 0.0
  %1765 = vmatpush1.msra.mxu0 0.0
  %1766 = vmatprep.subr.mxu0 0.0
  %1767 = vmatpush1.msra.mxu0 0.0
  %1768 = vmatprep.subr.mxu0 0.0
  %1769 = vmatpush1.msra.mxu0 0.0
  %1770 = vmatprep.subr.mxu0 0.0
  %1771 = vmatpush1.msra.mxu0 0.0
  %1772 = vmatprep.subr.mxu0 0.0
  %1773 = vmatpush1.msra.mxu0 0.0
  %1774 = vmatprep.subr.mxu0 0.0
  %1775 = vmatpush1.msra.mxu0 %v52
  %1776 = vmatprep.subr.mxu0 0.0
  %1777 = vmatpush1.msra.mxu0 %v51
  %1778 = vmatprep.subr.mxu0 0.0
  %1779 = vmatpush1.msra.mxu0 %v50
  %1780 = vmatprep.subr.mxu0 0.0
  %1781 = vmatpush1.msra.mxu0 %v49
  %1782 = vmatprep.subr.mxu0 0.0
  %1783 = vmatpush2.msra.mxu0 0.0
  %1784 = vmatprep.subr.mxu0 0.0
  %1785 = vmatpush2.msra.mxu0 0.0
  %1786 = vmatprep.subr.mxu0 0.0
  %1787 = vmatpush2.msra.mxu0 0.0
  %1788 = vmatprep.subr.mxu0 0.0
  %1789 = vmatpush2.msra.mxu0 0.0
  %1790 = vmatprep.subr.mxu0 0.0
  %1791 = vmatpush2.msra.mxu0 0.0
  %1792 = vmatprep.subr.mxu0 0.0
  %1793 = vmatpush2.msra.mxu0 0.0
  %1794 = vmatprep.subr.mxu0 0.0
  %1795 = vmatpush2.msra.mxu0 0.0
  %1796 = vmatprep.subr.mxu0 0.0
  %1797 = vmatpush2.msra.mxu0 0.0
  %1798 = vmatprep.subr.mxu0 0.0
  %1799 = vmatpush2.msra.mxu0 0.0
  %1800 = vmatprep.subr.mxu0 0.0
  %1801 = vmatpush2.msra.mxu0 0.0
  %1802 = vmatprep.subr.mxu0 0.0
  %1803 = vmatpush2.msra.mxu0 0.0
  %1804 = vmatprep.subr.mxu0 0.0
  %1805 = vmatpush2.msra.mxu0 0.0
  %1806 = vmatprep.subr.mxu0 0.0
  %1807 = vmatpush2.msra.mxu0 0.0
  %1808 = vmatprep.subr.mxu0 0.0
  %1809 = vmatpush2.msra.mxu0 0.0
  %1810 = vmatprep.subr.mxu0 0.0
  %1811 = vmatpush2.msra.mxu0 0.0
  %1812 = vmatprep.subr.mxu0 0.0
  %1813 = vmatpush2.msra.mxu0 0.0
  %1814 = vmatprep.mubr.f32.mxu0 0.0
  %1815 = vmatmul.mubr.f32.gmra.mxu0 %v1727
  %v1816 = vpop.f32.mrf.mxu0
  %v1817 = vadd.f32 %v1725, %v1816
  %v1818 = vpop.f32.mrf.mxu0
  %1819 = vmatprep.mubr.f32.mxu0 0.0
  %1820 = vmatmul.mubr.f32.gmra.mxu0 %v1730
  %v1821 = vpop.f32.mrf.mxu0
  %v1822 = vadd.f32 %v1725, %v1821
  %v1823 = vpop.f32.mrf.mxu0
  %1824 = vmatprep.mubr.f32.mxu0 0.0
  %1825 = vmatmul.mubr.f32.gmra.mxu0 %v1733
  %v1826 = vpop.f32.mrf.mxu0
  %v1827 = vadd.f32 %v1725, %v1826
  %v1828 = vpop.f32.mrf.mxu0
  %1829 = vmatprep.mubr.f32.mxu0 0.0
  %1830 = vmatmul.mubr.f32.gmra.mxu0 %v1736
  %v1831 = vpop.f32.mrf.mxu0
  %v1832 = vadd.f32 %v1725, %v1831
  %v1833 = vpop.f32.mrf.mxu0
  %1834 = vmatprep.mubr.f32.mxu0 0.0
  %1835 = vmatmul.mubr.f32.gmra.mxu0 %v1739
  %v1836 = vpop.f32.mrf.mxu0
  %v1837 = vadd.f32 %v1725, %v1836
  %v1838 = vpop.f32.mrf.mxu0
  %1839 = vmatprep.mubr.f32.mxu0 0.0
  %1840 = vmatmul.mubr.f32.gmra.mxu0 %v1742
  %v1841 = vpop.f32.mrf.mxu0
  %v1842 = vadd.f32 %v1725, %v1841
  %v1843 = vpop.f32.mrf.mxu0
  %1844 = vmatprep.mubr.f32.mxu0 0.0
  %1845 = vmatmul.mubr.f32.gmra.mxu0 %v1745
  %v1846 = vpop.f32.mrf.mxu0
  %v1847 = vadd.f32 %v1725, %v1846
  %v1848 = vpop.f32.mrf.mxu0
  %1849 = vmatprep.mubr.f32.mxu0 0.0
  %1850 = vmatmul.mubr.f32.gmra.mxu0 %v1748
  %v1851 = vpop.f32.mrf.mxu0
  %v1852 = vadd.f32 %v1725, %v1851
  %v1853 = vpop.f32.mrf.mxu0
  %1854 = vdwg.mxu0
  %1855 = vst [vmem:[%s5] sm:$0xff] %v1817
  %1856 = vst [vmem:[%s5 + $0x8] sm:$0xff] %v1822
  %1857 = vst [vmem:[%s5 + $0x10] sm:$0xff] %v1827
  %1858 = vst [vmem:[%s5 + $0x18] sm:$0xff] %v1832
  %1859 = vst [vmem:[%s5 + $0x20] sm:$0xff] %v1837
  %1860 = vst [vmem:[%s5 + $0x28] sm:$0xff] %v1842
  %1861 = vst [vmem:[%s5 + $0x30] sm:$0xff] %v1847
  %1862 = vst [vmem:[%s5 + $0x38] sm:$0xff] %v1852
  %v1863 = vlaneseq
  %v1864 = vshrl.u32 %v1863, 7
  %v1865 = vadd.s32 %v1864, 8
  %v1866 = vadd.s32 %v1864, 16
  %v1867 = vadd.s32 %v1864, 24
  %v1868 = vadd.s32 %v1864, 32
  %v1869 = vadd.s32 %v1864, 40
  %v1870 = vadd.s32 %v1864, 48
  %v1871 = vadd.s32 %v1864, 56
  %v1872 = vand.u32 %v1864, 7
  %v1873 = vand.u32 %v1865, 7
  %v1874 = vand.u32 %v1866, 7
  %v1875 = vand.u32 %v1867, 7
  %v1876 = vand.u32 %v1868, 7
  %v1877 = vand.u32 %v1869, 7
  %v1878 = vand.u32 %v1870, 7
  %v1879 = vand.u32 %v1871, 7
  %vm1880 = vcmp.lt.s32.totalorder %v1872, 2
  %vm1881 = vcmp.lt.s32.totalorder %v1873, 2
  %vm1882 = vcmp.lt.s32.totalorder %v1874, 2
  %vm1883 = vcmp.lt.s32.totalorder %v1875, 2
  %vm1884 = vcmp.lt.s32.totalorder %v1876, 2
  %vm1885 = vcmp.lt.s32.totalorder %v1877, 2
  %vm1886 = vcmp.lt.s32.totalorder %v1878, 2
  %vm1887 = vcmp.lt.s32.totalorder %v1879, 2
  %v1888 = vsel %vm1880, 1, 0
  %v1889 = vsel %vm1881, 1, 0
  %v1890 = vsel %vm1882, 1, 0
  %v1891 = vsel %vm1883, 1, 0
  %v1892 = vsel %vm1884, 1, 0
  %v1893 = vsel %vm1885, 1, 0
  %v1894 = vsel %vm1886, 1, 0
  %v1895 = vsel %vm1887, 1, 0
  %v1896 = vcvt.s32.f32 %v1888
  %v1897 = vcvt.s32.f32 %v1889
  %v1898 = vcvt.s32.f32 %v1890
  %v1899 = vcvt.s32.f32 %v1891
  %v1900 = vcvt.s32.f32 %v1892
  %v1901 = vcvt.s32.f32 %v1893
  %v1902 = vcvt.s32.f32 %v1894
  %v1903 = vcvt.s32.f32 %v1895
  %v1904 = vsub.f32 %v1817, %v66
  %v1905 = vsub.f32 %v1822, %v67
  %v1906 = vsub.f32 %v1827, %v68
  %v1907 = vsub.f32 %v1832, %v69
  %v1908 = vsub.f32 %v1837, %v70
  %v1909 = vsub.f32 %v1842, %v71
  %v1910 = vsub.f32 %v1847, %v72
  %v1911 = vsub.f32 %v1852, %v73
  %v1912 = vmul.f32 %v1904, %v1896
  %v1913 = vmul.f32 %v1905, %v1897
  %v1914 = vmul.f32 %v1906, %v1898
  %v1915 = vmul.f32 %v1907, %v1899
  %v1916 = vmul.f32 %v1908, %v1900
  %v1917 = vmul.f32 %v1909, %v1901
  %v1918 = vmul.f32 %v1910, %v1902
  %v1919 = vmul.f32 %v1911, %v1903
  %v1920 = vmul.f32 %v1912, %v1912
  %v1921 = vmul.f32 %v1913, %v1913
  %v1922 = vmul.f32 %v1914, %v1914
  %v1923 = vmul.f32 %v1915, %v1915
  %v1924 = vmul.f32 %v1916, %v1916
  %v1925 = vmul.f32 %v1917, %v1917
  %v1926 = vmul.f32 %v1918, %v1918
  %v1927 = vmul.f32 %v1919, %v1919
  %v1928 = vadd.f32 %v1920, %v1921
  %v1929 = vadd.f32 %v1928, %v1922
  %v1930 = vadd.f32 %v1929, %v1923
  %v1931 = vadd.f32 %v1930, %v1924
  %v1932 = vadd.f32 %v1931, %v1925
  %v1933 = vadd.f32 %v1932, %v1926
  %v1934 = vadd.f32 %v1933, %v1927
  %1935 = vadd.xlane.f32.xlu0 %v1934
  %v1936 = vpop.xlane.xlu0 %1935
  %v1937 = vrot.slane %v1936, 4
  %v1938 = vadd.f32 %v1936, %v1937
  %v1939 = vrot.slane %v1938, 2
  %v1940 = vadd.f32 %v1938, %v1939
  %v1941 = vrot.slane %v1940, 1
  %v1942 = vadd.f32 %v1940, %v1941
  %s1943 = vtos %v1942
  %v1944 = vstv %s1943
  %v1945 = vmul.f32 %v1944, 0.015625
  %vm1946 = vcmp.lt.s32.totalorder %v1864, 2
  %v1947 = vsel %vm1946, 1, 0
  %v1948 = vcvt.s32.f32 %v1947
  %v1949 = vadd.f32 %v851, 1.0
  %v1950 = vmul.f32 %v851, %v851
  %1952 = vrot.lane.b32.xlu0 %v1950, 16
  %v1953 = vpop.permute.xlu0 %1952
  %v1955 = vsub.f32 %v1949, %v1953
  %v1956 = vmul.f32 %v856, %v856
  %v1957 = vsub.f32 %v1955, %v1956
  %v1958 = vmul.f32 %v1957, %v1948
  %1960 = vrot.lane.b32.xlu0 %v1958, 112
  %v1961 = vpop.permute.xlu0 %1960
  %v1963 = vsel %vm863, %v1961, 0.0
  %1964 = vadd.xlane.f32.xlu0 %v1963
  %v1965 = vpop.xlane.xlu0 %1964
  %v1966 = vrot.slane %v1965, 4
  %v1967 = vadd.f32 %v1965, %v1966
  %v1968 = vrot.slane %v1967, 2
  %v1969 = vadd.f32 %v1967, %v1968
  %v1970 = vrot.slane %v1969, 1
  %v1971 = vadd.f32 %v1969, %v1970
  %s1972 = vtos %v1971
  %v1973 = vstv %s1972
  %v1974 = vmul.f32 %v1973, -0.25
  %v1975 = vmul.f32 %v1974, 0.00025
  %v1976 = vadd.f32 %v1945, %v1975
  %vm1977 = vcmp.eq.s32.totalorder %v24, 0
  %v1978 = vsel %vm1977, %v1976, 0.0
  %vm1979 = vcmp.eq.s32.totalorder %v24, 1
  %v1980 = vsel %vm1979, %v1945, 0.0
  %v1981 = vadd.f32 %v1978, %v1980
  %vm1982 = vcmp.eq.s32.totalorder %v24, 2
  %v1983 = vsub.f32 0.0, %v1974
  %v1984 = vsel %vm1982, %v1983, 0.0
  %v1985 = vadd.f32 %v1981, %v1984
  %1986 = vst [vmem:[%s6] sm:$0x1] %v1985
  // Predicated region
  $region22: #{vae_lstm_forward.1} parent=0 // pred_check
    _
  $region23: #{vae_lstm_forward.1} parent=0 // pred_check_branch
    %1988 = sbr.rel (0) target = $region25
  $region24: #{vae_lstm_forward.1} parent=0 // pred_region
    _
  $region25: #{vae_lstm_forward.1} parent=0 // pred_fallthru
    _
  // Predicated region
  $region26: #{vae_lstm_forward.1} parent=0 // pred_check
    _
  $region27: #{vae_lstm_forward.1} parent=0 // pred_check_branch
    %1990 = sbr.rel (0) target = $region29
  $region28: #{vae_lstm_forward.1} parent=0 // pred_region
    _
  $region29: #{vae_lstm_forward.1} parent=0 // pred_fallthru
    _
  // Predicated region
  $region30: #{vae_lstm_forward.1} parent=0 // pred_check
    _
  $region31: #{vae_lstm_forward.1} parent=0 // pred_check_branch
    %1992 = sbr.rel (0) target = $region33
  $region32: #{vae_lstm_forward.1} parent=0 // pred_region
    _
  $region33: #{vae_lstm_forward.1} parent=0 // pred_fallthru
    _
  // Predicated region
  $region34: #{vae_lstm_forward.1} parent=0 // pred_check
    _
  $region35: #{vae_lstm_forward.1} parent=0 // pred_check_branch
    %1994 = sbr.rel (0) target = $region37
  $region36: #{vae_lstm_forward.1} parent=0 // pred_region
    _
  $region37: #{vae_lstm_forward.1} parent=0 // pred_fallthru
    _

</llo_original>
